<compile_context>
chip_gen: v5e
topology: v5e:2x2
jax: 0.10.0
libtpu: 0.0.40
codegen_flags: <defaults>
</compile_context>

<pallas_src>
import functools

import jax
import jax.numpy as jnp
from jax.experimental import pallas as pl
from jax.experimental.pallas import tpu as pltpu

KSIZE = 7
PAD = (KSIZE - 1) // 2  # 3
LANES = 128


def _round_up(x, m):
    return ((x + m - 1) // m) * m


def _cdiv(a, b):
    return -(-a // b)


def _largest_divisor_le(n, cap):
    cap = int(max(1, min(cap, n)))
    for d in range(cap, 0, -1):
        if n % d == 0:
            return d
    return 1


def _choose_b_tile(n, cap):
    """Largest divisor of n <= cap; pad the batch instead when divisors are tiny."""
    cap = int(max(1, min(cap, n)))
    best = _largest_divisor_le(n, cap)
    if best * 2 <= cap:          # e.g. prime n: pad up rather than collapse to 1
        bt = cap
        return bt, _cdiv(n, bt) * bt
    return best, n


def spatial_gate_kernel(p_ref, x_ref, o_ref, max_ref, sum_ref, pad_ref, *,
                        H, W, WP, B_TILE, C_BLK, C_CHUNK, DENSE):
    # p_ref  : SMEM (99,)  folded conv weights (max plane, mean plane) + folded BN bias.
    # x_ref  : VMEM (B_TILE, C_BLK, Q, L) input block (dense: L=128, else (Q, L)=(H, W)).
    # o_ref  : VMEM (B_TILE, Q, 128) (dense) or (B_TILE, 1, H, W).
    # max_ref/sum_ref : VMEM (B_TILE, Q, L) running channel max / sum across C steps.
    # pad_ref: VMEM (2, B_TILE, H+6, WP) padded pooled planes (0 = max, 1 = sum).
    f32 = jnp.float32
    ci = pl.program_id(1)
    nc = pl.num_programs(1)

    # ------------- ChannelPool: streaming max / sum over this C block -------------
    @pl.when(ci == 0)
    def _init():
        max_ref[...] = jnp.full_like(max_ref, -jnp.inf)
        sum_ref[...] = jnp.zeros_like(sum_ref)

    n_inner = C_BLK // C_CHUNK

    def pool_body(k, carry):
        cm, cs = carry
        start = pl.multiple_of(k * C_CHUNK, C_CHUNK)
        xc = x_ref[:, pl.ds(start, C_CHUNK)].astype(f32)      # (B, Cc, Q, L)
        return jnp.maximum(cm, jnp.max(xc, axis=1)), cs + jnp.sum(xc, axis=1)

    cm, cs = jax.lax.fori_loop(0, n_inner, pool_body,
                               (max_ref[...], sum_ref[...]),
                               unroll=(n_inner <= 8))
    max_ref[...] = cm
    sum_ref[...] = cs

    # -------- last C step: pad, 7x7 conv, folded BN bias, sigmoid, store --------
    @pl.when(ci == nc - 1)
    def _epilogue():
        # Zero only the lanes/rows that can reach the output columns.
        col_zeros = jnp.zeros((2, B_TILE, H + 2 * PAD, PAD), f32)
        pad_ref[:, :, :, pl.ds(W, PAD)] = col_zeros             # right border
        pad_ref[:, :, :, pl.ds(WP - PAD, PAD)] = col_zeros      # wrap-around (left) border
        row_zeros = jnp.zeros((2, B_TILE, PAD, W), f32)
        pad_ref[:, :, pl.ds(0, PAD), pl.ds(0, W)] = row_zeros        # top
        pad_ref[:, :, pl.ds(PAD + H, PAD), pl.ds(0, W)] = row_zeros  # bottom

        # Relayout the pooled planes into the scratch interior (lanes [0, W)).
        if DENSE:
            R = LANES // W
            for h in range(H):
                q, j = divmod(h, R)
                pad_ref[0, :, PAD + h, pl.ds(0, W)] = cm[:, q, j * W:(j + 1) * W]
                pad_ref[1, :, PAD + h, pl.ds(0, W)] = cs[:, q, j * W:(j + 1) * W]
        else:
            pad_ref[0, :, pl.ds(PAD, H), pl.ds(0, W)] = cm
            pad_ref[1, :, pl.ds(PAD, H), pl.ds(0, W)] = cs

        # 7x7 conv (2 -> 1): 14 row slabs, 7 per-kj partials, 6 lane rolls (XLU).
        partials = [jnp.zeros((B_TILE, H, WP), f32) for _ in range(KSIZE)]
        for c in range(2):
            for ki in range(KSIZE):
                slab = pad_ref[c, :, pl.ds(ki, H), :]           # (B_TILE, H, WP)
                for kj in range(KSIZE):
                    wv = p_ref[c * KSIZE * KSIZE + ki * KSIZE + kj]
                    partials[kj] = partials[kj] + wv * slab
        acc = partials[PAD]                                     # kj == PAD: shift 0
        for kj in range(KSIZE):
            if kj != PAD:
                acc = acc + pltpu.roll(partials[kj], (PAD - kj) % WP, 2)

        y = acc[:, :, :W] + p_ref[2 * KSIZE * KSIZE]            # lane-aligned slice
        scale = pl.reciprocal(1.0 + jnp.exp(-y), approx=False)
        scale = scale.astype(o_ref.dtype)

        if DENSE:
            R = LANES // W
            for h in range(H):
                q, j = divmod(h, R)
                o_ref[:, q, pl.ds(j * W, W)] = scale[:, h, :]
        else:
            o_ref[:, 0] = scale


def spatial_gate(x, conv_w, bn_gamma, bn_beta, bn_mean, bn_var, eps=1e-5):
    """x: (N, C, H, W). Returns the sigmoid attention map (N, 1, H, W), float32."""
    N, C, H, W = x.shape
    assert conv_w.shape == (1, 2, KSIZE, KSIZE)

    WP = _round_up(W + 2 * PAD, LANES)        # lane-padded conv scratch width
    itemsize = x.dtype.itemsize

    # Lane-dense view of the spatial dims when they pack exactly into 128-lane rows.
    DENSE = (W < LANES) and (LANES % W == 0) and (H % (LANES // W) == 0) and (H <= 128)
    if DENSE:
        Q, L = (H * W) // LANES, LANES
        x_k = x.reshape(N, C, Q, L)
    else:
        Q, L = H, W
        x_k = x

    # ----------------------------- VMEM budget / blocking -----------------------------
    try:
        vmem_cap = int(pltpu.get_tpu_info().vmem_capacity_bytes)
    except Exception:
        vmem_cap = 64 * 1024 * 1024           # conservative (v7x-sized part)
    vmem_limit = min(96 * 1024 * 1024, vmem_cap * 3 // 4)

    # B_TILE: keep >= 2 batch grid steps (v7x megacore) and bound the conv epilogue's
    # live vregs (7 partials + acc + slab + temps per batch element).
    vregs_per_b = 10 * _cdiv(H, 8) * (WP // LANES)
    cap = min(16, max(1, 48 // vregs_per_b), max(1, N // 2))
    B_TILE, N_pad = _choose_b_tile(N, cap)

    # C_BLK: target ~8 MiB per (double-buffered) input block under the VMEM limit.
    fixed_bytes = 4 * (2 * B_TILE * _round_up(H + 2 * PAD, 8) * WP          # pad scratch
                       + 4 * B_TILE * _round_up(Q, 8) * _round_up(L, LANES))  # pool + out
    per_c = B_TILE * Q * L * itemsize
    cap_c = max(1, min((8 * 1024 * 1024) // max(per_c, 1),
                       (int(vmem_limit * 0.6) - fixed_bytes) // max(2 * per_c, 1)))
    C_BLK = _largest_divisor_le(C, cap_c)
    n_c_steps = C // C_BLK

    # Inner streaming chunk for the pool (bounds live vregs during the reduction).
    vregs_per_chan = B_TILE * _cdiv(Q, 8) * _cdiv(L, LANES)
    C_CHUNK = _largest_divisor_le(C_BLK, max(1, 32 // max(1, vregs_per_chan)))

    if N_pad != N:
        x_k = jnp.pad(x_k, ((0, N_pad - N),) + ((0, 0),) * (x_k.ndim - 1))

    # -------------- fold BatchNorm (eval) and 1/C into the conv weights --------------
    bn_scale = (bn_gamma / jnp.sqrt(bn_var + eps)).astype(jnp.float32)[0]
    bn_bias = (bn_beta.astype(jnp.float32)[0]
               - bn_mean.astype(jnp.float32)[0] * bn_scale)
    w = conv_w.astype(jnp.float32)
    w_max = (w[0, 0] * bn_scale).reshape(-1)          # weights for the max plane
    w_sum = (w[0, 1] * (bn_scale / C)).reshape(-1)    # weights for the mean plane
    params = jnp.concatenate([w_max, w_sum, bn_bias.reshape(1)])  # (99,)

    kernel = functools.partial(spatial_gate_kernel, H=H, W=W, WP=WP,
                               B_TILE=B_TILE, C_BLK=C_BLK, C_CHUNK=C_CHUNK,
                               DENSE=DENSE)

    x_map = lambda b, c, p: (b, c, 0, 0)
    in_block = (B_TILE, C_BLK, Q, L)
    in_bytes = B_TILE * C_BLK * Q * L * itemsize
    if n_c_steps >= 3 and 3 * in_bytes + fixed_bytes < int(vmem_limit * 0.6):
        x_spec = pl.BlockSpec(in_block, x_map, pipeline_mode=pl.Buffered(3))
    else:
        x_spec = pl.BlockSpec(in_block, x_map)

    if DENSE:
        out_shape = jax.ShapeDtypeStruct((N_pad, Q, LANES), jnp.float32)
        out_spec = pl.BlockSpec((B_TILE, Q, LANES), lambda b, c, p: (b, 0, 0))
    else:
        out_shape = jax.ShapeDtypeStruct((N_pad, 1, H, W), jnp.float32)
        out_spec = pl.BlockSpec((B_TILE, 1, H, W), lambda b, c, p: (b, 0, 0, 0))

    out = pl.pallas_call(
        kernel,
        out_shape=out_shape,
        grid_spec=pltpu.PrefetchScalarGridSpec(
            num_scalar_prefetch=1,                    # folded weights + bias -> SMEM
            grid=(N_pad // B_TILE, n_c_steps),
            in_specs=[x_spec],
            out_specs=out_spec,
            scratch_shapes=[
                pltpu.VMEM((B_TILE, Q, L), jnp.float32),                  # running max
                pltpu.VMEM((B_TILE, Q, L), jnp.float32),                  # running sum
                pltpu.VMEM((2, B_TILE, H + 2 * PAD, WP), jnp.float32),    # padded planes
            ],
        ),
        compiler_params=pltpu.CompilerParams(
            dimension_semantics=("parallel", "arbitrary"),
            vmem_limit_bytes=vmem_limit,
        ),
    )(params, x_k)

    if DENSE:
        out = out.reshape(N_pad, 1, H, W)
    return out[:N]


def spatial_gate_ref(x, conv_w, bn_gamma, bn_beta, bn_mean, bn_var, eps=1e-5):
    """Pure-JAX reference for verification."""
    cmax = jnp.max(x, axis=1, keepdims=True)
    cmean = jnp.mean(x, axis=1, keepdims=True)
    xc = jnp.concatenate([cmax, cmean], axis=1)  # (N, 2, H, W)
    y = jax.lax.conv_general_dilated(
        xc, conv_w, window_strides=(1, 1), padding=((PAD, PAD), (PAD, PAD)),
        dimension_numbers=("NCHW", "OIHW", "NCHW"))
    scale = bn_gamma / jnp.sqrt(bn_var + eps)
    bias = bn_beta - bn_mean * scale
    y = y * scale[None, :, None, None] + bias[None, :, None, None]
    return jax.nn.sigmoid(y)


if __name__ == "__main__":
    key = jax.random.PRNGKey(0)
    k_x, k_w = jax.random.split(key)

    N, C, H, W = 2, 4, 16, 16
    x = jax.random.normal(k_x, (N, C, H, W), dtype=jnp.float32)

    # Deterministic parameter init (fresh BatchNorm: gamma=1, beta=0, mean=0, var=1).
    fan_in = 2 * KSIZE * KSIZE
    bound = 1.0 / (fan_in ** 0.5)
    conv_w = jax.random.uniform(k_w, (1, 2, KSIZE, KSIZE), jnp.float32,
                                minval=-bound, maxval=bound)
    bn_gamma = jnp.ones((1,), jnp.float32)
    bn_beta = jnp.zeros((1,), jnp.float32)
    bn_mean = jnp.zeros((1,), jnp.float32)
    bn_var = jnp.ones((1,), jnp.float32)

    out = spatial_gate(x, conv_w, bn_gamma, bn_beta, bn_mean, bn_var)
    out = jax.block_until_ready(out)

    ref = spatial_gate_ref(x, conv_w, bn_gamma, bn_beta, bn_mean, bn_var)
    assert out.shape == (N, 1, H, W)
    assert jnp.allclose(out, ref, atol=1e-5, rtol=1e-5)

    print("KERNEL_OK")
</pallas_src>

<mosaic_0001>
module attributes {stable_mosaic.version = 11 : i64} {
  func.func @spatial_gate_kernel(%arg0: i32, %arg1: i32, %arg2: memref<99xf32, #tpu.memory_space<smem>>, %arg3: memref<1x4x2x128xf32, #tpu.memory_space<vmem>>, %arg4: memref<1x2x128xf32, #tpu.memory_space<vmem>>, %arg5: memref<1x2x128xf32, #tpu.memory_space<vmem>>, %arg6: memref<1x2x128xf32, #tpu.memory_space<vmem>>, %arg7: memref<2x1x22x128xf32, #tpu.memory_space<vmem>>) attributes {dimension_semantics = [#tpu.dimension_semantics<parallel>, #tpu.dimension_semantics<arbitrary>], iteration_bounds = array<i64: 2, 1>, scalar_prefetch = 1 : i64, scratch_operands = 3 : i64, tpu.core_type = #tpu.core_type<tc>, window_params = [{transform_indices = @transform_0, window_bounds = array<i64: 1, 4, 2, 128>}, {transform_indices = @transform_1, window_bounds = array<i64: 1, 2, 128>}]} {
    %c0_i32 = arith.constant 0 : i32
    %0 = arith.cmpi eq, %arg1, %c0_i32 : i32
    %1 = arith.extui %0 : i1 to i32
    %c0_i32_0 = arith.constant 0 : i32
    %2 = arith.cmpi ne, %1, %c0_i32_0 : i32
    scf.if %2 {
      %cst_19 = arith.constant 0xFF800000 : f32
      %18 = vector.broadcast %cst_19 : f32 to vector<1x2x128xf32>
      %c0_20 = arith.constant 0 : index
      %c0_21 = arith.constant 0 : index
      %c0_22 = arith.constant 0 : index
      %19 = vector.load %arg5[%c0_20, %c0_21, %c0_22] : memref<1x2x128xf32, #tpu.memory_space<vmem>>, vector<1x2x128xf32>
      tpu.vector_store %arg5[%c0_20, %c0_21, %c0_22], %18 {strides = array<i32>} : memref<1x2x128xf32, #tpu.memory_space<vmem>>, vector<1x2x128xf32>,
      %cst_23 = arith.constant 0.000000e+00 : f32
      %20 = vector.broadcast %cst_23 : f32 to vector<1x2x128xf32>
      %c0_24 = arith.constant 0 : index
      %c0_25 = arith.constant 0 : index
      %c0_26 = arith.constant 0 : index
      %21 = vector.load %arg6[%c0_24, %c0_25, %c0_26] : memref<1x2x128xf32, #tpu.memory_space<vmem>>, vector<1x2x128xf32>
      tpu.vector_store %arg6[%c0_24, %c0_25, %c0_26], %20 {strides = array<i32>} : memref<1x2x128xf32, #tpu.memory_space<vmem>>, vector<1x2x128xf32>,
    } else {
    }
    %c0 = arith.constant 0 : index
    %c0_1 = arith.constant 0 : index
    %c0_2 = arith.constant 0 : index
    %3 = vector.load %arg5[%c0, %c0_1, %c0_2] : memref<1x2x128xf32, #tpu.memory_space<vmem>>, vector<1x2x128xf32>
    %c0_3 = arith.constant 0 : index
    %c0_4 = arith.constant 0 : index
    %c0_5 = arith.constant 0 : index
    %4 = vector.load %arg6[%c0_3, %c0_4, %c0_5] : memref<1x2x128xf32, #tpu.memory_space<vmem>>, vector<1x2x128xf32>
    %c0_i32_6 = arith.constant 0 : i32
    %c4_i32 = arith.constant 4 : i32
    %5 = arith.muli %c0_i32_6, %c4_i32 : i32
    %6 = tpu.assume_multiple %5, 4 : i32
    %c0_7 = arith.constant 0 : index
    %7 = arith.index_cast %6 : i32 to index
    %c0_8 = arith.constant 0 : index
    %c0_9 = arith.constant 0 : index
    %8 = vector.load %arg3[%c0_7, %7, %c0_8, %c0_9] : memref<1x4x2x128xf32, #tpu.memory_space<vmem>>, vector<1x4x2x128xf32>
    %cst = arith.constant dense<0xFF800000> : vector<1x2x128xf32>
    %9 = vector.multi_reduction <maximumf>, %8, %cst [1] : vector<1x4x2x128xf32> to vector<1x2x128xf32>
    %10 = arith.maximumf %3, %9 : vector<1x2x128xf32>
    %cst_10 = arith.constant dense<0.000000e+00> : vector<1x2x128xf32>
    %11 = vector.multi_reduction <add>, %8, %cst_10 [1] : vector<1x4x2x128xf32> to vector<1x2x128xf32>
    %12 = arith.addf %4, %11 : vector<1x2x128xf32>
    %c1_i32 = arith.constant 1 : i32
    %c0_11 = arith.constant 0 : index
    %c0_12 = arith.constant 0 : index
    %c0_13 = arith.constant 0 : index
    %13 = vector.load %arg5[%c0_11, %c0_12, %c0_13] : memref<1x2x128xf32, #tpu.memory_space<vmem>>, vector<1x2x128xf32>
    tpu.vector_store %arg5[%c0_11, %c0_12, %c0_13], %10 {strides = array<i32>} : memref<1x2x128xf32, #tpu.memory_space<vmem>>, vector<1x2x128xf32>,
    %c0_14 = arith.constant 0 : index
    %c0_15 = arith.constant 0 : index
    %c0_16 = arith.constant 0 : index
    %14 = vector.load %arg6[%c0_14, %c0_15, %c0_16] : memref<1x2x128xf32, #tpu.memory_space<vmem>>, vector<1x2x128xf32>
    tpu.vector_store %arg6[%c0_14, %c0_15, %c0_16], %12 {strides = array<i32>} : memref<1x2x128xf32, #tpu.memory_space<vmem>>, vector<1x2x128xf32>,
    %c0_i32_17 = arith.constant 0 : i32
    %15 = arith.cmpi eq, %arg1, %c0_i32_17 : i32
    %16 = arith.extui %15 : i1 to i32
    %c0_i32_18 = arith.constant 0 : i32
    %17 = arith.cmpi ne, %16, %c0_i32_18 : i32
    scf.if %17 {
      %cst_19 = arith.constant 0.000000e+00 : f32
      %18 = vector.broadcast %cst_19 : f32 to vector<2x1x22x3xf32>
      %c0_20 = arith.constant 0 : index
      %c0_21 = arith.constant 0 : index
      %c0_22 = arith.constant 0 : index
      %c16 = arith.constant 16 : index
      %19 = vector.load %arg7[%c0_20, %c0_21, %c0_22, %c16] : memref<2x1x22x128xf32, #tpu.memory_space<vmem>>, vector<2x1x22x3xf32>
      tpu.vector_store %arg7[%c0_20, %c0_21, %c0_22, %c16], %18 {strides = array<i32>} : memref<2x1x22x128xf32, #tpu.memory_space<vmem>>, vector<2x1x22x3xf32>,
      %c0_23 = arith.constant 0 : index
      %c0_24 = arith.constant 0 : index
      %c0_25 = arith.constant 0 : index
      %c125 = arith.constant 125 : index
      %20 = vector.load %arg7[%c0_23, %c0_24, %c0_25, %c125] : memref<2x1x22x128xf32, #tpu.memory_space<vmem>>, vector<2x1x22x3xf32>
      tpu.vector_store %arg7[%c0_23, %c0_24, %c0_25, %c125], %18 {strides = array<i32>} : memref<2x1x22x128xf32, #tpu.memory_space<vmem>>, vector<2x1x22x3xf32>,
      %cst_26 = arith.constant 0.000000e+00 : f32
      %21 = vector.broadcast %cst_26 : f32 to vector<2x1x3x16xf32>
      %c0_27 = arith.constant 0 : index
      %c0_28 = arith.constant 0 : index
      %c0_29 = arith.constant 0 : index
      %c0_30 = arith.constant 0 : index
      %22 = vector.load %arg7[%c0_27, %c0_28, %c0_29, %c0_30] : memref<2x1x22x128xf32, #tpu.memory_space<vmem>>, vector<2x1x3x16xf32>
      tpu.vector_store %arg7[%c0_27, %c0_28, %c0_29, %c0_30], %21 {strides = array<i32>} : memref<2x1x22x128xf32, #tpu.memory_space<vmem>>, vector<2x1x3x16xf32>,
      %c0_31 = arith.constant 0 : index
      %c0_32 = arith.constant 0 : index
      %c19 = arith.constant 19 : index
      %c0_33 = arith.constant 0 : index
      %23 = vector.load %arg7[%c0_31, %c0_32, %c19, %c0_33] : memref<2x1x22x128xf32, #tpu.memory_space<vmem>>, vector<2x1x3x16xf32>
      tpu.vector_store %arg7[%c0_31, %c0_32, %c19, %c0_33], %21 {strides = array<i32>} : memref<2x1x22x128xf32, #tpu.memory_space<vmem>>, vector<2x1x3x16xf32>,
      %24 = vector.extract_strided_slice %10 {offsets = [0, 0, 0], sizes = [1, 1, 16], strides = [1, 1, 1]} : vector<1x2x128xf32> to vector<1x1x16xf32>
      %25 = vector.shape_cast %24 : vector<1x1x16xf32> to vector<1x16xf32>
      %c0_34 = arith.constant 0 : index
      %c0_35 = arith.constant 0 : index
      %c3 = arith.constant 3 : index
      %c0_36 = arith.constant 0 : index
      %26 = vector.load %arg7[%c0_34, %c0_35, %c3, %c0_36] : memref<2x1x22x128xf32, #tpu.memory_space<vmem>>, vector<1x1x1x16xf32>
      %27 = vector.shape_cast %26 : vector<1x1x1x16xf32> to vector<1x16xf32>
      %28 = vector.shape_cast %25 : vector<1x16xf32> to vector<1x1x1x16xf32>
      tpu.vector_store %arg7[%c0_34, %c0_35, %c3, %c0_36], %28 {strides = array<i32>} : memref<2x1x22x128xf32, #tpu.memory_space<vmem>>, vector<1x1x1x16xf32>,
      %29 = vector.extract_strided_slice %12 {offsets = [0, 0, 0], sizes = [1, 1, 16], strides = [1, 1, 1]} : vector<1x2x128xf32> to vector<1x1x16xf32>
      %30 = vector.shape_cast %29 : vector<1x1x16xf32> to vector<1x16xf32>
      %c1 = arith.constant 1 : index
      %c0_37 = arith.constant 0 : index
      %c3_38 = arith.constant 3 : index
      %c0_39 = arith.constant 0 : index
      %31 = vector.load %arg7[%c1, %c0_37, %c3_38, %c0_39] : memref<2x1x22x128xf32, #tpu.memory_space<vmem>>, vector<1x1x1x16xf32>
      %32 = vector.shape_cast %31 : vector<1x1x1x16xf32> to vector<1x16xf32>
      %33 = vector.shape_cast %30 : vector<1x16xf32> to vector<1x1x1x16xf32>
      tpu.vector_store %arg7[%c1, %c0_37, %c3_38, %c0_39], %33 {strides = array<i32>} : memref<2x1x22x128xf32, #tpu.memory_space<vmem>>, vector<1x1x1x16xf32>,
      %34 = vector.extract_strided_slice %10 {offsets = [0, 0, 16], sizes = [1, 1, 16], strides = [1, 1, 1]} : vector<1x2x128xf32> to vector<1x1x16xf32>
      %35 = vector.shape_cast %34 : vector<1x1x16xf32> to vector<1x16xf32>
      %c0_40 = arith.constant 0 : index
      %c0_41 = arith.constant 0 : index
      %c4 = arith.constant 4 : index
      %c0_42 = arith.constant 0 : index
      %36 = vector.load %arg7[%c0_40, %c0_41, %c4, %c0_42] : memref<2x1x22x128xf32, #tpu.memory_space<vmem>>, vector<1x1x1x16xf32>
      %37 = vector.shape_cast %36 : vector<1x1x1x16xf32> to vector<1x16xf32>
      %38 = vector.shape_cast %35 : vector<1x16xf32> to vector<1x1x1x16xf32>
      tpu.vector_store %arg7[%c0_40, %c0_41, %c4, %c0_42], %38 {strides = array<i32>} : memref<2x1x22x128xf32, #tpu.memory_space<vmem>>, vector<1x1x1x16xf32>,
      %39 = vector.extract_strided_slice %12 {offsets = [0, 0, 16], sizes = [1, 1, 16], strides = [1, 1, 1]} : vector<1x2x128xf32> to vector<1x1x16xf32>
      %40 = vector.shape_cast %39 : vector<1x1x16xf32> to vector<1x16xf32>
      %c1_43 = arith.constant 1 : index
      %c0_44 = arith.constant 0 : index
      %c4_45 = arith.constant 4 : index
      %c0_46 = arith.constant 0 : index
      %41 = vector.load %arg7[%c1_43, %c0_44, %c4_45, %c0_46] : memref<2x1x22x128xf32, #tpu.memory_space<vmem>>, vector<1x1x1x16xf32>
      %42 = vector.shape_cast %41 : vector<1x1x1x16xf32> to vector<1x16xf32>
      %43 = vector.shape_cast %40 : vector<1x16xf32> to vector<1x1x1x16xf32>
      tpu.vector_store %arg7[%c1_43, %c0_44, %c4_45, %c0_46], %43 {strides = array<i32>} : memref<2x1x22x128xf32, #tpu.memory_space<vmem>>, vector<1x1x1x16xf32>,
      %44 = vector.extract_strided_slice %10 {offsets = [0, 0, 32], sizes = [1, 1, 16], strides = [1, 1, 1]} : vector<1x2x128xf32> to vector<1x1x16xf32>
      %45 = vector.shape_cast %44 : vector<1x1x16xf32> to vector<1x16xf32>
      %c0_47 = arith.constant 0 : index
      %c0_48 = arith.constant 0 : index
      %c5 = arith.constant 5 : index
      %c0_49 = arith.constant 0 : index
      %46 = vector.load %arg7[%c0_47, %c0_48, %c5, %c0_49] : memref<2x1x22x128xf32, #tpu.memory_space<vmem>>, vector<1x1x1x16xf32>
      %47 = vector.shape_cast %46 : vector<1x1x1x16xf32> to vector<1x16xf32>
      %48 = vector.shape_cast %45 : vector<1x16xf32> to vector<1x1x1x16xf32>
      tpu.vector_store %arg7[%c0_47, %c0_48, %c5, %c0_49], %48 {strides = array<i32>} : memref<2x1x22x128xf32, #tpu.memory_space<vmem>>, vector<1x1x1x16xf32>,
      %49 = vector.extract_strided_slice %12 {offsets = [0, 0, 32], sizes = [1, 1, 16], strides = [1, 1, 1]} : vector<1x2x128xf32> to vector<1x1x16xf32>
      %50 = vector.shape_cast %49 : vector<1x1x16xf32> to vector<1x16xf32>
      %c1_50 = arith.constant 1 : index
      %c0_51 = arith.constant 0 : index
      %c5_52 = arith.constant 5 : index
      %c0_53 = arith.constant 0 : index
      %51 = vector.load %arg7[%c1_50, %c0_51, %c5_52, %c0_53] : memref<2x1x22x128xf32, #tpu.memory_space<vmem>>, vector<1x1x1x16xf32>
      %52 = vector.shape_cast %51 : vector<1x1x1x16xf32> to vector<1x16xf32>
      %53 = vector.shape_cast %50 : vector<1x16xf32> to vector<1x1x1x16xf32>
      tpu.vector_store %arg7[%c1_50, %c0_51, %c5_52, %c0_53], %53 {strides = array<i32>} : memref<2x1x22x128xf32, #tpu.memory_space<vmem>>, vector<1x1x1x16xf32>,
      %54 = vector.extract_strided_slice %10 {offsets = [0, 0, 48], sizes = [1, 1, 16], strides = [1, 1, 1]} : vector<1x2x128xf32> to vector<1x1x16xf32>
      %55 = vector.shape_cast %54 : vector<1x1x16xf32> to vector<1x16xf32>
      %c0_54 = arith.constant 0 : index
      %c0_55 = arith.constant 0 : index
      %c6 = arith.constant 6 : index
      %c0_56 = arith.constant 0 : index
      %56 = vector.load %arg7[%c0_54, %c0_55, %c6, %c0_56] : memref<2x1x22x128xf32, #tpu.memory_space<vmem>>, vector<1x1x1x16xf32>
      %57 = vector.shape_cast %56 : vector<1x1x1x16xf32> to vector<1x16xf32>
      %58 = vector.shape_cast %55 : vector<1x16xf32> to vector<1x1x1x16xf32>
      tpu.vector_store %arg7[%c0_54, %c0_55, %c6, %c0_56], %58 {strides = array<i32>} : memref<2x1x22x128xf32, #tpu.memory_space<vmem>>, vector<1x1x1x16xf32>,
      %59 = vector.extract_strided_slice %12 {offsets = [0, 0, 48], sizes = [1, 1, 16], strides = [1, 1, 1]} : vector<1x2x128xf32> to vector<1x1x16xf32>
      %60 = vector.shape_cast %59 : vector<1x1x16xf32> to vector<1x16xf32>
      %c1_57 = arith.constant 1 : index
      %c0_58 = arith.constant 0 : index
      %c6_59 = arith.constant 6 : index
      %c0_60 = arith.constant 0 : index
      %61 = vector.load %arg7[%c1_57, %c0_58, %c6_59, %c0_60] : memref<2x1x22x128xf32, #tpu.memory_space<vmem>>, vector<1x1x1x16xf32>
      %62 = vector.shape_cast %61 : vector<1x1x1x16xf32> to vector<1x16xf32>
      %63 = vector.shape_cast %60 : vector<1x16xf32> to vector<1x1x1x16xf32>
      tpu.vector_store %arg7[%c1_57, %c0_58, %c6_59, %c0_60], %63 {strides = array<i32>} : memref<2x1x22x128xf32, #tpu.memory_space<vmem>>, vector<1x1x1x16xf32>,
      %64 = vector.extract_strided_slice %10 {offsets = [0, 0, 64], sizes = [1, 1, 16], strides = [1, 1, 1]} : vector<1x2x128xf32> to vector<1x1x16xf32>
      %65 = vector.shape_cast %64 : vector<1x1x16xf32> to vector<1x16xf32>
      %c0_61 = arith.constant 0 : index
      %c0_62 = arith.constant 0 : index
      %c7 = arith.constant 7 : index
      %c0_63 = arith.constant 0 : index
      %66 = vector.load %arg7[%c0_61, %c0_62, %c7, %c0_63] : memref<2x1x22x128xf32, #tpu.memory_space<vmem>>, vector<1x1x1x16xf32>
      %67 = vector.shape_cast %66 : vector<1x1x1x16xf32> to vector<1x16xf32>
      %68 = vector.shape_cast %65 : vector<1x16xf32> to vector<1x1x1x16xf32>
      tpu.vector_store %arg7[%c0_61, %c0_62, %c7, %c0_63], %68 {strides = array<i32>} : memref<2x1x22x128xf32, #tpu.memory_space<vmem>>, vector<1x1x1x16xf32>,
      %69 = vector.extract_strided_slice %12 {offsets = [0, 0, 64], sizes = [1, 1, 16], strides = [1, 1, 1]} : vector<1x2x128xf32> to vector<1x1x16xf32>
      %70 = vector.shape_cast %69 : vector<1x1x16xf32> to vector<1x16xf32>
      %c1_64 = arith.constant 1 : index
      %c0_65 = arith.constant 0 : index
      %c7_66 = arith.constant 7 : index
      %c0_67 = arith.constant 0 : index
      %71 = vector.load %arg7[%c1_64, %c0_65, %c7_66, %c0_67] : memref<2x1x22x128xf32, #tpu.memory_space<vmem>>, vector<1x1x1x16xf32>
      %72 = vector.shape_cast %71 : vector<1x1x1x16xf32> to vector<1x16xf32>
      %73 = vector.shape_cast %70 : vector<1x16xf32> to vector<1x1x1x16xf32>
      tpu.vector_store %arg7[%c1_64, %c0_65, %c7_66, %c0_67], %73 {strides = array<i32>} : memref<2x1x22x128xf32, #tpu.memory_space<vmem>>, vector<1x1x1x16xf32>,
      %74 = vector.extract_strided_slice %10 {offsets = [0, 0, 80], sizes = [1, 1, 16], strides = [1, 1, 1]} : vector<1x2x128xf32> to vector<1x1x16xf32>
      %75 = vector.shape_cast %74 : vector<1x1x16xf32> to vector<1x16xf32>
      %c0_68 = arith.constant 0 : index
      %c0_69 = arith.constant 0 : index
      %c8 = arith.constant 8 : index
      %c0_70 = arith.constant 0 : index
      %76 = vector.load %arg7[%c0_68, %c0_69, %c8, %c0_70] : memref<2x1x22x128xf32, #tpu.memory_space<vmem>>, vector<1x1x1x16xf32>
      %77 = vector.shape_cast %76 : vector<1x1x1x16xf32> to vector<1x16xf32>
      %78 = vector.shape_cast %75 : vector<1x16xf32> to vector<1x1x1x16xf32>
      tpu.vector_store %arg7[%c0_68, %c0_69, %c8, %c0_70], %78 {strides = array<i32>} : memref<2x1x22x128xf32, #tpu.memory_space<vmem>>, vector<1x1x1x16xf32>,
      %79 = vector.extract_strided_slice %12 {offsets = [0, 0, 80], sizes = [1, 1, 16], strides = [1, 1, 1]} : vector<1x2x128xf32> to vector<1x1x16xf32>
      %80 = vector.shape_cast %79 : vector<1x1x16xf32> to vector<1x16xf32>
      %c1_71 = arith.constant 1 : index
      %c0_72 = arith.constant 0 : index
      %c8_73 = arith.constant 8 : index
      %c0_74 = arith.constant 0 : index
      %81 = vector.load %arg7[%c1_71, %c0_72, %c8_73, %c0_74] : memref<2x1x22x128xf32, #tpu.memory_space<vmem>>, vector<1x1x1x16xf32>
      %82 = vector.shape_cast %81 : vector<1x1x1x16xf32> to vector<1x16xf32>
      %83 = vector.shape_cast %80 : vector<1x16xf32> to vector<1x1x1x16xf32>
      tpu.vector_store %arg7[%c1_71, %c0_72, %c8_73, %c0_74], %83 {strides = array<i32>} : memref<2x1x22x128xf32, #tpu.memory_space<vmem>>, vector<1x1x1x16xf32>,
      %84 = vector.extract_strided_slice %10 {offsets = [0, 0, 96], sizes = [1, 1, 16], strides = [1, 1, 1]} : vector<1x2x128xf32> to vector<1x1x16xf32>
      %85 = vector.shape_cast %84 : vector<1x1x16xf32> to vector<1x16xf32>
      %c0_75 = arith.constant 0 : index
      %c0_76 = arith.constant 0 : index
      %c9 = arith.constant 9 : index
      %c0_77 = arith.constant 0 : index
      %86 = vector.load %arg7[%c0_75, %c0_76, %c9, %c0_77] : memref<2x1x22x128xf32, #tpu.memory_space<vmem>>, vector<1x1x1x16xf32>
      %87 = vector.shape_cast %86 : vector<1x1x1x16xf32> to vector<1x16xf32>
      %88 = vector.shape_cast %85 : vector<1x16xf32> to vector<1x1x1x16xf32>
      tpu.vector_store %arg7[%c0_75, %c0_76, %c9, %c0_77], %88 {strides = array<i32>} : memref<2x1x22x128xf32, #tpu.memory_space<vmem>>, vector<1x1x1x16xf32>,
      %89 = vector.extract_strided_slice %12 {offsets = [0, 0, 96], sizes = [1, 1, 16], strides = [1, 1, 1]} : vector<1x2x128xf32> to vector<1x1x16xf32>
      %90 = vector.shape_cast %89 : vector<1x1x16xf32> to vector<1x16xf32>
      %c1_78 = arith.constant 1 : index
      %c0_79 = arith.constant 0 : index
      %c9_80 = arith.constant 9 : index
      %c0_81 = arith.constant 0 : index
      %91 = vector.load %arg7[%c1_78, %c0_79, %c9_80, %c0_81] : memref<2x1x22x128xf32, #tpu.memory_space<vmem>>, vector<1x1x1x16xf32>
      %92 = vector.shape_cast %91 : vector<1x1x1x16xf32> to vector<1x16xf32>
      %93 = vector.shape_cast %90 : vector<1x16xf32> to vector<1x1x1x16xf32>
      tpu.vector_store %arg7[%c1_78, %c0_79, %c9_80, %c0_81], %93 {strides = array<i32>} : memref<2x1x22x128xf32, #tpu.memory_space<vmem>>, vector<1x1x1x16xf32>,
      %94 = vector.extract_strided_slice %10 {offsets = [0, 0, 112], sizes = [1, 1, 16], strides = [1, 1, 1]} : vector<1x2x128xf32> to vector<1x1x16xf32>
      %95 = vector.shape_cast %94 : vector<1x1x16xf32> to vector<1x16xf32>
      %c0_82 = arith.constant 0 : index
      %c0_83 = arith.constant 0 : index
      %c10 = arith.constant 10 : index
      %c0_84 = arith.constant 0 : index
      %96 = vector.load %arg7[%c0_82, %c0_83, %c10, %c0_84] : memref<2x1x22x128xf32, #tpu.memory_space<vmem>>, vector<1x1x1x16xf32>
      %97 = vector.shape_cast %96 : vector<1x1x1x16xf32> to vector<1x16xf32>
      %98 = vector.shape_cast %95 : vector<1x16xf32> to vector<1x1x1x16xf32>
      tpu.vector_store %arg7[%c0_82, %c0_83, %c10, %c0_84], %98 {strides = array<i32>} : memref<2x1x22x128xf32, #tpu.memory_space<vmem>>, vector<1x1x1x16xf32>,
      %99 = vector.extract_strided_slice %12 {offsets = [0, 0, 112], sizes = [1, 1, 16], strides = [1, 1, 1]} : vector<1x2x128xf32> to vector<1x1x16xf32>
      %100 = vector.shape_cast %99 : vector<1x1x16xf32> to vector<1x16xf32>
      %c1_85 = arith.constant 1 : index
      %c0_86 = arith.constant 0 : index
      %c10_87 = arith.constant 10 : index
      %c0_88 = arith.constant 0 : index
      %101 = vector.load %arg7[%c1_85, %c0_86, %c10_87, %c0_88] : memref<2x1x22x128xf32, #tpu.memory_space<vmem>>, vector<1x1x1x16xf32>
      %102 = vector.shape_cast %101 : vector<1x1x1x16xf32> to vector<1x16xf32>
      %103 = vector.shape_cast %100 : vector<1x16xf32> to vector<1x1x1x16xf32>
      tpu.vector_store %arg7[%c1_85, %c0_86, %c10_87, %c0_88], %103 {strides = array<i32>} : memref<2x1x22x128xf32, #tpu.memory_space<vmem>>, vector<1x1x1x16xf32>,
      %104 = vector.extract_strided_slice %10 {offsets = [0, 1, 0], sizes = [1, 1, 16], strides = [1, 1, 1]} : vector<1x2x128xf32> to vector<1x1x16xf32>
      %105 = vector.shape_cast %104 : vector<1x1x16xf32> to vector<1x16xf32>
      %c0_89 = arith.constant 0 : index
      %c0_90 = arith.constant 0 : index
      %c11 = arith.constant 11 : index
      %c0_91 = arith.constant 0 : index
      %106 = vector.load %arg7[%c0_89, %c0_90, %c11, %c0_91] : memref<2x1x22x128xf32, #tpu.memory_space<vmem>>, vector<1x1x1x16xf32>
      %107 = vector.shape_cast %106 : vector<1x1x1x16xf32> to vector<1x16xf32>
      %108 = vector.shape_cast %105 : vector<1x16xf32> to vector<1x1x1x16xf32>
      tpu.vector_store %arg7[%c0_89, %c0_90, %c11, %c0_91], %108 {strides = array<i32>} : memref<2x1x22x128xf32, #tpu.memory_space<vmem>>, vector<1x1x1x16xf32>,
      %109 = vector.extract_strided_slice %12 {offsets = [0, 1, 0], sizes = [1, 1, 16], strides = [1, 1, 1]} : vector<1x2x128xf32> to vector<1x1x16xf32>
      %110 = vector.shape_cast %109 : vector<1x1x16xf32> to vector<1x16xf32>
      %c1_92 = arith.constant 1 : index
      %c0_93 = arith.constant 0 : index
      %c11_94 = arith.constant 11 : index
      %c0_95 = arith.constant 0 : index
      %111 = vector.load %arg7[%c1_92, %c0_93, %c11_94, %c0_95] : memref<2x1x22x128xf32, #tpu.memory_space<vmem>>, vector<1x1x1x16xf32>
      %112 = vector.shape_cast %111 : vector<1x1x1x16xf32> to vector<1x16xf32>
      %113 = vector.shape_cast %110 : vector<1x16xf32> to vector<1x1x1x16xf32>
      tpu.vector_store %arg7[%c1_92, %c0_93, %c11_94, %c0_95], %113 {strides = array<i32>} : memref<2x1x22x128xf32, #tpu.memory_space<vmem>>, vector<1x1x1x16xf32>,
      %114 = vector.extract_strided_slice %10 {offsets = [0, 1, 16], sizes = [1, 1, 16], strides = [1, 1, 1]} : vector<1x2x128xf32> to vector<1x1x16xf32>
      %115 = vector.shape_cast %114 : vector<1x1x16xf32> to vector<1x16xf32>
      %c0_96 = arith.constant 0 : index
      %c0_97 = arith.constant 0 : index
      %c12 = arith.constant 12 : index
      %c0_98 = arith.constant 0 : index
      %116 = vector.load %arg7[%c0_96, %c0_97, %c12, %c0_98] : memref<2x1x22x128xf32, #tpu.memory_space<vmem>>, vector<1x1x1x16xf32>
      %117 = vector.shape_cast %116 : vector<1x1x1x16xf32> to vector<1x16xf32>
      %118 = vector.shape_cast %115 : vector<1x16xf32> to vector<1x1x1x16xf32>
      tpu.vector_store %arg7[%c0_96, %c0_97, %c12, %c0_98], %118 {strides = array<i32>} : memref<2x1x22x128xf32, #tpu.memory_space<vmem>>, vector<1x1x1x16xf32>,
      %119 = vector.extract_strided_slice %12 {offsets = [0, 1, 16], sizes = [1, 1, 16], strides = [1, 1, 1]} : vector<1x2x128xf32> to vector<1x1x16xf32>
      %120 = vector.shape_cast %119 : vector<1x1x16xf32> to vector<1x16xf32>
      %c1_99 = arith.constant 1 : index
      %c0_100 = arith.constant 0 : index
      %c12_101 = arith.constant 12 : index
      %c0_102 = arith.constant 0 : index
      %121 = vector.load %arg7[%c1_99, %c0_100, %c12_101, %c0_102] : memref<2x1x22x128xf32, #tpu.memory_space<vmem>>, vector<1x1x1x16xf32>
      %122 = vector.shape_cast %121 : vector<1x1x1x16xf32> to vector<1x16xf32>
      %123 = vector.shape_cast %120 : vector<1x16xf32> to vector<1x1x1x16xf32>
      tpu.vector_store %arg7[%c1_99, %c0_100, %c12_101, %c0_102], %123 {strides = array<i32>} : memref<2x1x22x128xf32, #tpu.memory_space<vmem>>, vector<1x1x1x16xf32>,
      %124 = vector.extract_strided_slice %10 {offsets = [0, 1, 32], sizes = [1, 1, 16], strides = [1, 1, 1]} : vector<1x2x128xf32> to vector<1x1x16xf32>
      %125 = vector.shape_cast %124 : vector<1x1x16xf32> to vector<1x16xf32>
      %c0_103 = arith.constant 0 : index
      %c0_104 = arith.constant 0 : index
      %c13 = arith.constant 13 : index
      %c0_105 = arith.constant 0 : index
      %126 = vector.load %arg7[%c0_103, %c0_104, %c13, %c0_105] : memref<2x1x22x128xf32, #tpu.memory_space<vmem>>, vector<1x1x1x16xf32>
      %127 = vector.shape_cast %126 : vector<1x1x1x16xf32> to vector<1x16xf32>
      %128 = vector.shape_cast %125 : vector<1x16xf32> to vector<1x1x1x16xf32>
      tpu.vector_store %arg7[%c0_103, %c0_104, %c13, %c0_105], %128 {strides = array<i32>} : memref<2x1x22x128xf32, #tpu.memory_space<vmem>>, vector<1x1x1x16xf32>,
      %129 = vector.extract_strided_slice %12 {offsets = [0, 1, 32], sizes = [1, 1, 16], strides = [1, 1, 1]} : vector<1x2x128xf32> to vector<1x1x16xf32>
      %130 = vector.shape_cast %129 : vector<1x1x16xf32> to vector<1x16xf32>
      %c1_106 = arith.constant 1 : index
      %c0_107 = arith.constant 0 : index
      %c13_108 = arith.constant 13 : index
      %c0_109 = arith.constant 0 : index
      %131 = vector.load %arg7[%c1_106, %c0_107, %c13_108, %c0_109] : memref<2x1x22x128xf32, #tpu.memory_space<vmem>>, vector<1x1x1x16xf32>
      %132 = vector.shape_cast %131 : vector<1x1x1x16xf32> to vector<1x16xf32>
      %133 = vector.shape_cast %130 : vector<1x16xf32> to vector<1x1x1x16xf32>
      tpu.vector_store %arg7[%c1_106, %c0_107, %c13_108, %c0_109], %133 {strides = array<i32>} : memref<2x1x22x128xf32, #tpu.memory_space<vmem>>, vector<1x1x1x16xf32>,
      %134 = vector.extract_strided_slice %10 {offsets = [0, 1, 48], sizes = [1, 1, 16], strides = [1, 1, 1]} : vector<1x2x128xf32> to vector<1x1x16xf32>
      %135 = vector.shape_cast %134 : vector<1x1x16xf32> to vector<1x16xf32>
      %c0_110 = arith.constant 0 : index
      %c0_111 = arith.constant 0 : index
      %c14 = arith.constant 14 : index
      %c0_112 = arith.constant 0 : index
      %136 = vector.load %arg7[%c0_110, %c0_111, %c14, %c0_112] : memref<2x1x22x128xf32, #tpu.memory_space<vmem>>, vector<1x1x1x16xf32>
      %137 = vector.shape_cast %136 : vector<1x1x1x16xf32> to vector<1x16xf32>
      %138 = vector.shape_cast %135 : vector<1x16xf32> to vector<1x1x1x16xf32>
      tpu.vector_store %arg7[%c0_110, %c0_111, %c14, %c0_112], %138 {strides = array<i32>} : memref<2x1x22x128xf32, #tpu.memory_space<vmem>>, vector<1x1x1x16xf32>,
      %139 = vector.extract_strided_slice %12 {offsets = [0, 1, 48], sizes = [1, 1, 16], strides = [1, 1, 1]} : vector<1x2x128xf32> to vector<1x1x16xf32>
      %140 = vector.shape_cast %139 : vector<1x1x16xf32> to vector<1x16xf32>
      %c1_113 = arith.constant 1 : index
      %c0_114 = arith.constant 0 : index
      %c14_115 = arith.constant 14 : index
      %c0_116 = arith.constant 0 : index
      %141 = vector.load %arg7[%c1_113, %c0_114, %c14_115, %c0_116] : memref<2x1x22x128xf32, #tpu.memory_space<vmem>>, vector<1x1x1x16xf32>
      %142 = vector.shape_cast %141 : vector<1x1x1x16xf32> to vector<1x16xf32>
      %143 = vector.shape_cast %140 : vector<1x16xf32> to vector<1x1x1x16xf32>
      tpu.vector_store %arg7[%c1_113, %c0_114, %c14_115, %c0_116], %143 {strides = array<i32>} : memref<2x1x22x128xf32, #tpu.memory_space<vmem>>, vector<1x1x1x16xf32>,
      %144 = vector.extract_strided_slice %10 {offsets = [0, 1, 64], sizes = [1, 1, 16], strides = [1, 1, 1]} : vector<1x2x128xf32> to vector<1x1x16xf32>
      %145 = vector.shape_cast %144 : vector<1x1x16xf32> to vector<1x16xf32>
      %c0_117 = arith.constant 0 : index
      %c0_118 = arith.constant 0 : index
      %c15 = arith.constant 15 : index
      %c0_119 = arith.constant 0 : index
      %146 = vector.load %arg7[%c0_117, %c0_118, %c15, %c0_119] : memref<2x1x22x128xf32, #tpu.memory_space<vmem>>, vector<1x1x1x16xf32>
      %147 = vector.shape_cast %146 : vector<1x1x1x16xf32> to vector<1x16xf32>
      %148 = vector.shape_cast %145 : vector<1x16xf32> to vector<1x1x1x16xf32>
      tpu.vector_store %arg7[%c0_117, %c0_118, %c15, %c0_119], %148 {strides = array<i32>} : memref<2x1x22x128xf32, #tpu.memory_space<vmem>>, vector<1x1x1x16xf32>,
      %149 = vector.extract_strided_slice %12 {offsets = [0, 1, 64], sizes = [1, 1, 16], strides = [1, 1, 1]} : vector<1x2x128xf32> to vector<1x1x16xf32>
      %150 = vector.shape_cast %149 : vector<1x1x16xf32> to vector<1x16xf32>
      %c1_120 = arith.constant 1 : index
      %c0_121 = arith.constant 0 : index
      %c15_122 = arith.constant 15 : index
      %c0_123 = arith.constant 0 : index
      %151 = vector.load %arg7[%c1_120, %c0_121, %c15_122, %c0_123] : memref<2x1x22x128xf32, #tpu.memory_space<vmem>>, vector<1x1x1x16xf32>
      %152 = vector.shape_cast %151 : vector<1x1x1x16xf32> to vector<1x16xf32>
      %153 = vector.shape_cast %150 : vector<1x16xf32> to vector<1x1x1x16xf32>
      tpu.vector_store %arg7[%c1_120, %c0_121, %c15_122, %c0_123], %153 {strides = array<i32>} : memref<2x1x22x128xf32, #tpu.memory_space<vmem>>, vector<1x1x1x16xf32>,
      %154 = vector.extract_strided_slice %10 {offsets = [0, 1, 80], sizes = [1, 1, 16], strides = [1, 1, 1]} : vector<1x2x128xf32> to vector<1x1x16xf32>
      %155 = vector.shape_cast %154 : vector<1x1x16xf32> to vector<1x16xf32>
      %c0_124 = arith.constant 0 : index
      %c0_125 = arith.constant 0 : index
      %c16_126 = arith.constant 16 : index
      %c0_127 = arith.constant 0 : index
      %156 = vector.load %arg7[%c0_124, %c0_125, %c16_126, %c0_127] : memref<2x1x22x128xf32, #tpu.memory_space<vmem>>, vector<1x1x1x16xf32>
      %157 = vector.shape_cast %156 : vector<1x1x1x16xf32> to vector<1x16xf32>
      %158 = vector.shape_cast %155 : vector<1x16xf32> to vector<1x1x1x16xf32>
      tpu.vector_store %arg7[%c0_124, %c0_125, %c16_126, %c0_127], %158 {strides = array<i32>} : memref<2x1x22x128xf32, #tpu.memory_space<vmem>>, vector<1x1x1x16xf32>,
      %159 = vector.extract_strided_slice %12 {offsets = [0, 1, 80], sizes = [1, 1, 16], strides = [1, 1, 1]} : vector<1x2x128xf32> to vector<1x1x16xf32>
      %160 = vector.shape_cast %159 : vector<1x1x16xf32> to vector<1x16xf32>
      %c1_128 = arith.constant 1 : index
      %c0_129 = arith.constant 0 : index
      %c16_130 = arith.constant 16 : index
      %c0_131 = arith.constant 0 : index
      %161 = vector.load %arg7[%c1_128, %c0_129, %c16_130, %c0_131] : memref<2x1x22x128xf32, #tpu.memory_space<vmem>>, vector<1x1x1x16xf32>
      %162 = vector.shape_cast %161 : vector<1x1x1x16xf32> to vector<1x16xf32>
      %163 = vector.shape_cast %160 : vector<1x16xf32> to vector<1x1x1x16xf32>
      tpu.vector_store %arg7[%c1_128, %c0_129, %c16_130, %c0_131], %163 {strides = array<i32>} : memref<2x1x22x128xf32, #tpu.memory_space<vmem>>, vector<1x1x1x16xf32>,
      %164 = vector.extract_strided_slice %10 {offsets = [0, 1, 96], sizes = [1, 1, 16], strides = [1, 1, 1]} : vector<1x2x128xf32> to vector<1x1x16xf32>
      %165 = vector.shape_cast %164 : vector<1x1x16xf32> to vector<1x16xf32>
      %c0_132 = arith.constant 0 : index
      %c0_133 = arith.constant 0 : index
      %c17 = arith.constant 17 : index
      %c0_134 = arith.constant 0 : index
      %166 = vector.load %arg7[%c0_132, %c0_133, %c17, %c0_134] : memref<2x1x22x128xf32, #tpu.memory_space<vmem>>, vector<1x1x1x16xf32>
      %167 = vector.shape_cast %166 : vector<1x1x1x16xf32> to vector<1x16xf32>
      %168 = vector.shape_cast %165 : vector<1x16xf32> to vector<1x1x1x16xf32>
      tpu.vector_store %arg7[%c0_132, %c0_133, %c17, %c0_134], %168 {strides = array<i32>} : memref<2x1x22x128xf32, #tpu.memory_space<vmem>>, vector<1x1x1x16xf32>,
      %169 = vector.extract_strided_slice %12 {offsets = [0, 1, 96], sizes = [1, 1, 16], strides = [1, 1, 1]} : vector<1x2x128xf32> to vector<1x1x16xf32>
      %170 = vector.shape_cast %169 : vector<1x1x16xf32> to vector<1x16xf32>
      %c1_135 = arith.constant 1 : index
      %c0_136 = arith.constant 0 : index
      %c17_137 = arith.constant 17 : index
      %c0_138 = arith.constant 0 : index
      %171 = vector.load %arg7[%c1_135, %c0_136, %c17_137, %c0_138] : memref<2x1x22x128xf32, #tpu.memory_space<vmem>>, vector<1x1x1x16xf32>
      %172 = vector.shape_cast %171 : vector<1x1x1x16xf32> to vector<1x16xf32>
      %173 = vector.shape_cast %170 : vector<1x16xf32> to vector<1x1x1x16xf32>
      tpu.vector_store %arg7[%c1_135, %c0_136, %c17_137, %c0_138], %173 {strides = array<i32>} : memref<2x1x22x128xf32, #tpu.memory_space<vmem>>, vector<1x1x1x16xf32>,
      %174 = vector.extract_strided_slice %10 {offsets = [0, 1, 112], sizes = [1, 1, 16], strides = [1, 1, 1]} : vector<1x2x128xf32> to vector<1x1x16xf32>
      %175 = vector.shape_cast %174 : vector<1x1x16xf32> to vector<1x16xf32>
      %c0_139 = arith.constant 0 : index
      %c0_140 = arith.constant 0 : index
      %c18 = arith.constant 18 : index
      %c0_141 = arith.constant 0 : index
      %176 = vector.load %arg7[%c0_139, %c0_140, %c18, %c0_141] : memref<2x1x22x128xf32, #tpu.memory_space<vmem>>, vector<1x1x1x16xf32>
      %177 = vector.shape_cast %176 : vector<1x1x1x16xf32> to vector<1x16xf32>
      %178 = vector.shape_cast %175 : vector<1x16xf32> to vector<1x1x1x16xf32>
      tpu.vector_store %arg7[%c0_139, %c0_140, %c18, %c0_141], %178 {strides = array<i32>} : memref<2x1x22x128xf32, #tpu.memory_space<vmem>>, vector<1x1x1x16xf32>,
      %179 = vector.extract_strided_slice %12 {offsets = [0, 1, 112], sizes = [1, 1, 16], strides = [1, 1, 1]} : vector<1x2x128xf32> to vector<1x1x16xf32>
      %180 = vector.shape_cast %179 : vector<1x1x16xf32> to vector<1x16xf32>
      %c1_142 = arith.constant 1 : index
      %c0_143 = arith.constant 0 : index
      %c18_144 = arith.constant 18 : index
      %c0_145 = arith.constant 0 : index
      %181 = vector.load %arg7[%c1_142, %c0_143, %c18_144, %c0_145] : memref<2x1x22x128xf32, #tpu.memory_space<vmem>>, vector<1x1x1x16xf32>
      %182 = vector.shape_cast %181 : vector<1x1x1x16xf32> to vector<1x16xf32>
      %183 = vector.shape_cast %180 : vector<1x16xf32> to vector<1x1x1x16xf32>
      tpu.vector_store %arg7[%c1_142, %c0_143, %c18_144, %c0_145], %183 {strides = array<i32>} : memref<2x1x22x128xf32, #tpu.memory_space<vmem>>, vector<1x1x1x16xf32>,
      %cst_146 = arith.constant 0.000000e+00 : f32
      %184 = vector.broadcast %cst_146 : f32 to vector<1x16x128xf32>
      %cst_147 = arith.constant 0.000000e+00 : f32
      %185 = vector.broadcast %cst_147 : f32 to vector<1x16x128xf32>
      %cst_148 = arith.constant 0.000000e+00 : f32
      %186 = vector.broadcast %cst_148 : f32 to vector<1x16x128xf32>
      %cst_149 = arith.constant 0.000000e+00 : f32
      %187 = vector.broadcast %cst_149 : f32 to vector<1x16x128xf32>
      %cst_150 = arith.constant 0.000000e+00 : f32
      %188 = vector.broadcast %cst_150 : f32 to vector<1x16x128xf32>
      %cst_151 = arith.constant 0.000000e+00 : f32
      %189 = vector.broadcast %cst_151 : f32 to vector<1x16x128xf32>
      %cst_152 = arith.constant 0.000000e+00 : f32
      %190 = vector.broadcast %cst_152 : f32 to vector<1x16x128xf32>
      %c0_153 = arith.constant 0 : index
      %c0_154 = arith.constant 0 : index
      %c0_155 = arith.constant 0 : index
      %c0_156 = arith.constant 0 : index
      %191 = vector.load %arg7[%c0_153, %c0_154, %c0_155, %c0_156] : memref<2x1x22x128xf32, #tpu.memory_space<vmem>>, vector<1x1x16x128xf32>
      %192 = vector.shape_cast %191 : vector<1x1x16x128xf32> to vector<1x16x128xf32>
      %c0_157 = arith.constant 0 : index
      %193 = memref.load %arg2[%c0_157] : memref<99xf32, #tpu.memory_space<smem>>
      %194 = vector.broadcast %193 : f32 to vector<1x16x128xf32>
      %195 = arith.mulf %194, %192 : vector<1x16x128xf32>
      %196 = arith.addf %184, %195 : vector<1x16x128xf32>
      %c1_158 = arith.constant 1 : index
      %197 = memref.load %arg2[%c1_158] : memref<99xf32, #tpu.memory_space<smem>>
      %198 = vector.broadcast %197 : f32 to vector<1x16x128xf32>
      %199 = arith.mulf %198, %192 : vector<1x16x128xf32>
      %200 = arith.addf %185, %199 : vector<1x16x128xf32>
      %c2 = arith.constant 2 : index
      %201 = memref.load %arg2[%c2] : memref<99xf32, #tpu.memory_space<smem>>
      %202 = vector.broadcast %201 : f32 to vector<1x16x128xf32>
      %203 = arith.mulf %202, %192 : vector<1x16x128xf32>
      %204 = arith.addf %186, %203 : vector<1x16x128xf32>
      %c3_159 = arith.constant 3 : index
      %205 = memref.load %arg2[%c3_159] : memref<99xf32, #tpu.memory_space<smem>>
      %206 = vector.broadcast %205 : f32 to vector<1x16x128xf32>
      %207 = arith.mulf %206, %192 : vector<1x16x128xf32>
      %208 = arith.addf %187, %207 : vector<1x16x128xf32>
      %c4_160 = arith.constant 4 : index
      %209 = memref.load %arg2[%c4_160] : memref<99xf32, #tpu.memory_space<smem>>
      %210 = vector.broadcast %209 : f32 to vector<1x16x128xf32>
      %211 = arith.mulf %210, %192 : vector<1x16x128xf32>
      %212 = arith.addf %188, %211 : vector<1x16x128xf32>
      %c5_161 = arith.constant 5 : index
      %213 = memref.load %arg2[%c5_161] : memref<99xf32, #tpu.memory_space<smem>>
      %214 = vector.broadcast %213 : f32 to vector<1x16x128xf32>
      %215 = arith.mulf %214, %192 : vector<1x16x128xf32>
      %216 = arith.addf %189, %215 : vector<1x16x128xf32>
      %c6_162 = arith.constant 6 : index
      %217 = memref.load %arg2[%c6_162] : memref<99xf32, #tpu.memory_space<smem>>
      %218 = vector.broadcast %217 : f32 to vector<1x16x128xf32>
      %219 = arith.mulf %218, %192 : vector<1x16x128xf32>
      %220 = arith.addf %190, %219 : vector<1x16x128xf32>
      %c0_163 = arith.constant 0 : index
      %c0_164 = arith.constant 0 : index
      %c1_165 = arith.constant 1 : index
      %c0_166 = arith.constant 0 : index
      %221 = vector.load %arg7[%c0_163, %c0_164, %c1_165, %c0_166] : memref<2x1x22x128xf32, #tpu.memory_space<vmem>>, vector<1x1x16x128xf32>
      %222 = vector.shape_cast %221 : vector<1x1x16x128xf32> to vector<1x16x128xf32>
      %c7_167 = arith.constant 7 : index
      %223 = memref.load %arg2[%c7_167] : memref<99xf32, #tpu.memory_space<smem>>
      %224 = vector.broadcast %223 : f32 to vector<1x16x128xf32>
      %225 = arith.mulf %224, %222 : vector<1x16x128xf32>
      %226 = arith.addf %196, %225 : vector<1x16x128xf32>
      %c8_168 = arith.constant 8 : index
      %227 = memref.load %arg2[%c8_168] : memref<99xf32, #tpu.memory_space<smem>>
      %228 = vector.broadcast %227 : f32 to vector<1x16x128xf32>
      %229 = arith.mulf %228, %222 : vector<1x16x128xf32>
      %230 = arith.addf %200, %229 : vector<1x16x128xf32>
      %c9_169 = arith.constant 9 : index
      %231 = memref.load %arg2[%c9_169] : memref<99xf32, #tpu.memory_space<smem>>
      %232 = vector.broadcast %231 : f32 to vector<1x16x128xf32>
      %233 = arith.mulf %232, %222 : vector<1x16x128xf32>
      %234 = arith.addf %204, %233 : vector<1x16x128xf32>
      %c10_170 = arith.constant 10 : index
      %235 = memref.load %arg2[%c10_170] : memref<99xf32, #tpu.memory_space<smem>>
      %236 = vector.broadcast %235 : f32 to vector<1x16x128xf32>
      %237 = arith.mulf %236, %222 : vector<1x16x128xf32>
      %238 = arith.addf %208, %237 : vector<1x16x128xf32>
      %c11_171 = arith.constant 11 : index
      %239 = memref.load %arg2[%c11_171] : memref<99xf32, #tpu.memory_space<smem>>
      %240 = vector.broadcast %239 : f32 to vector<1x16x128xf32>
      %241 = arith.mulf %240, %222 : vector<1x16x128xf32>
      %242 = arith.addf %212, %241 : vector<1x16x128xf32>
      %c12_172 = arith.constant 12 : index
      %243 = memref.load %arg2[%c12_172] : memref<99xf32, #tpu.memory_space<smem>>
      %244 = vector.broadcast %243 : f32 to vector<1x16x128xf32>
      %245 = arith.mulf %244, %222 : vector<1x16x128xf32>
      %246 = arith.addf %216, %245 : vector<1x16x128xf32>
      %c13_173 = arith.constant 13 : index
      %247 = memref.load %arg2[%c13_173] : memref<99xf32, #tpu.memory_space<smem>>
      %248 = vector.broadcast %247 : f32 to vector<1x16x128xf32>
      %249 = arith.mulf %248, %222 : vector<1x16x128xf32>
      %250 = arith.addf %220, %249 : vector<1x16x128xf32>
      %c0_174 = arith.constant 0 : index
      %c0_175 = arith.constant 0 : index
      %c2_176 = arith.constant 2 : index
      %c0_177 = arith.constant 0 : index
      %251 = vector.load %arg7[%c0_174, %c0_175, %c2_176, %c0_177] : memref<2x1x22x128xf32, #tpu.memory_space<vmem>>, vector<1x1x16x128xf32>
      %252 = vector.shape_cast %251 : vector<1x1x16x128xf32> to vector<1x16x128xf32>
      %c14_178 = arith.constant 14 : index
      %253 = memref.load %arg2[%c14_178] : memref<99xf32, #tpu.memory_space<smem>>
      %254 = vector.broadcast %253 : f32 to vector<1x16x128xf32>
      %255 = arith.mulf %254, %252 : vector<1x16x128xf32>
      %256 = arith.addf %226, %255 : vector<1x16x128xf32>
      %c15_179 = arith.constant 15 : index
      %257 = memref.load %arg2[%c15_179] : memref<99xf32, #tpu.memory_space<smem>>
      %258 = vector.broadcast %257 : f32 to vector<1x16x128xf32>
      %259 = arith.mulf %258, %252 : vector<1x16x128xf32>
      %260 = arith.addf %230, %259 : vector<1x16x128xf32>
      %c16_180 = arith.constant 16 : index
      %261 = memref.load %arg2[%c16_180] : memref<99xf32, #tpu.memory_space<smem>>
      %262 = vector.broadcast %261 : f32 to vector<1x16x128xf32>
      %263 = arith.mulf %262, %252 : vector<1x16x128xf32>
      %264 = arith.addf %234, %263 : vector<1x16x128xf32>
      %c17_181 = arith.constant 17 : index
      %265 = memref.load %arg2[%c17_181] : memref<99xf32, #tpu.memory_space<smem>>
      %266 = vector.broadcast %265 : f32 to vector<1x16x128xf32>
      %267 = arith.mulf %266, %252 : vector<1x16x128xf32>
      %268 = arith.addf %238, %267 : vector<1x16x128xf32>
      %c18_182 = arith.constant 18 : index
      %269 = memref.load %arg2[%c18_182] : memref<99xf32, #tpu.memory_space<smem>>
      %270 = vector.broadcast %269 : f32 to vector<1x16x128xf32>
      %271 = arith.mulf %270, %252 : vector<1x16x128xf32>
      %272 = arith.addf %242, %271 : vector<1x16x128xf32>
      %c19_183 = arith.constant 19 : index
      %273 = memref.load %arg2[%c19_183] : memref<99xf32, #tpu.memory_space<smem>>
      %274 = vector.broadcast %273 : f32 to vector<1x16x128xf32>
      %275 = arith.mulf %274, %252 : vector<1x16x128xf32>
      %276 = arith.addf %246, %275 : vector<1x16x128xf32>
      %c20 = arith.constant 20 : index
      %277 = memref.load %arg2[%c20] : memref<99xf32, #tpu.memory_space<smem>>
      %278 = vector.broadcast %277 : f32 to vector<1x16x128xf32>
      %279 = arith.mulf %278, %252 : vector<1x16x128xf32>
      %280 = arith.addf %250, %279 : vector<1x16x128xf32>
      %c0_184 = arith.constant 0 : index
      %c0_185 = arith.constant 0 : index
      %c3_186 = arith.constant 3 : index
      %c0_187 = arith.constant 0 : index
      %281 = vector.load %arg7[%c0_184, %c0_185, %c3_186, %c0_187] : memref<2x1x22x128xf32, #tpu.memory_space<vmem>>, vector<1x1x16x128xf32>
      %282 = vector.shape_cast %281 : vector<1x1x16x128xf32> to vector<1x16x128xf32>
      %c21 = arith.constant 21 : index
      %283 = memref.load %arg2[%c21] : memref<99xf32, #tpu.memory_space<smem>>
      %284 = vector.broadcast %283 : f32 to vector<1x16x128xf32>
      %285 = arith.mulf %284, %282 : vector<1x16x128xf32>
      %286 = arith.addf %256, %285 : vector<1x16x128xf32>
      %c22 = arith.constant 22 : index
      %287 = memref.load %arg2[%c22] : memref<99xf32, #tpu.memory_space<smem>>
      %288 = vector.broadcast %287 : f32 to vector<1x16x128xf32>
      %289 = arith.mulf %288, %282 : vector<1x16x128xf32>
      %290 = arith.addf %260, %289 : vector<1x16x128xf32>
      %c23 = arith.constant 23 : index
      %291 = memref.load %arg2[%c23] : memref<99xf32, #tpu.memory_space<smem>>
      %292 = vector.broadcast %291 : f32 to vector<1x16x128xf32>
      %293 = arith.mulf %292, %282 : vector<1x16x128xf32>
      %294 = arith.addf %264, %293 : vector<1x16x128xf32>
      %c24 = arith.constant 24 : index
      %295 = memref.load %arg2[%c24] : memref<99xf32, #tpu.memory_space<smem>>
      %296 = vector.broadcast %295 : f32 to vector<1x16x128xf32>
      %297 = arith.mulf %296, %282 : vector<1x16x128xf32>
      %298 = arith.addf %268, %297 : vector<1x16x128xf32>
      %c25 = arith.constant 25 : index
      %299 = memref.load %arg2[%c25] : memref<99xf32, #tpu.memory_space<smem>>
      %300 = vector.broadcast %299 : f32 to vector<1x16x128xf32>
      %301 = arith.mulf %300, %282 : vector<1x16x128xf32>
      %302 = arith.addf %272, %301 : vector<1x16x128xf32>
      %c26 = arith.constant 26 : index
      %303 = memref.load %arg2[%c26] : memref<99xf32, #tpu.memory_space<smem>>
      %304 = vector.broadcast %303 : f32 to vector<1x16x128xf32>
      %305 = arith.mulf %304, %282 : vector<1x16x128xf32>
      %306 = arith.addf %276, %305 : vector<1x16x128xf32>
      %c27 = arith.constant 27 : index
      %307 = memref.load %arg2[%c27] : memref<99xf32, #tpu.memory_space<smem>>
      %308 = vector.broadcast %307 : f32 to vector<1x16x128xf32>
      %309 = arith.mulf %308, %282 : vector<1x16x128xf32>
      %310 = arith.addf %280, %309 : vector<1x16x128xf32>
      %c0_188 = arith.constant 0 : index
      %c0_189 = arith.constant 0 : index
      %c4_190 = arith.constant 4 : index
      %c0_191 = arith.constant 0 : index
      %311 = vector.load %arg7[%c0_188, %c0_189, %c4_190, %c0_191] : memref<2x1x22x128xf32, #tpu.memory_space<vmem>>, vector<1x1x16x128xf32>
      %312 = vector.shape_cast %311 : vector<1x1x16x128xf32> to vector<1x16x128xf32>
      %c28 = arith.constant 28 : index
      %313 = memref.load %arg2[%c28] : memref<99xf32, #tpu.memory_space<smem>>
      %314 = vector.broadcast %313 : f32 to vector<1x16x128xf32>
      %315 = arith.mulf %314, %312 : vector<1x16x128xf32>
      %316 = arith.addf %286, %315 : vector<1x16x128xf32>
      %c29 = arith.constant 29 : index
      %317 = memref.load %arg2[%c29] : memref<99xf32, #tpu.memory_space<smem>>
      %318 = vector.broadcast %317 : f32 to vector<1x16x128xf32>
      %319 = arith.mulf %318, %312 : vector<1x16x128xf32>
      %320 = arith.addf %290, %319 : vector<1x16x128xf32>
      %c30 = arith.constant 30 : index
      %321 = memref.load %arg2[%c30] : memref<99xf32, #tpu.memory_space<smem>>
      %322 = vector.broadcast %321 : f32 to vector<1x16x128xf32>
      %323 = arith.mulf %322, %312 : vector<1x16x128xf32>
      %324 = arith.addf %294, %323 : vector<1x16x128xf32>
      %c31 = arith.constant 31 : index
      %325 = memref.load %arg2[%c31] : memref<99xf32, #tpu.memory_space<smem>>
      %326 = vector.broadcast %325 : f32 to vector<1x16x128xf32>
      %327 = arith.mulf %326, %312 : vector<1x16x128xf32>
      %328 = arith.addf %298, %327 : vector<1x16x128xf32>
      %c32 = arith.constant 32 : index
      %329 = memref.load %arg2[%c32] : memref<99xf32, #tpu.memory_space<smem>>
      %330 = vector.broadcast %329 : f32 to vector<1x16x128xf32>
      %331 = arith.mulf %330, %312 : vector<1x16x128xf32>
      %332 = arith.addf %302, %331 : vector<1x16x128xf32>
      %c33 = arith.constant 33 : index
      %333 = memref.load %arg2[%c33] : memref<99xf32, #tpu.memory_space<smem>>
      %334 = vector.broadcast %333 : f32 to vector<1x16x128xf32>
      %335 = arith.mulf %334, %312 : vector<1x16x128xf32>
      %336 = arith.addf %306, %335 : vector<1x16x128xf32>
      %c34 = arith.constant 34 : index
      %337 = memref.load %arg2[%c34] : memref<99xf32, #tpu.memory_space<smem>>
      %338 = vector.broadcast %337 : f32 to vector<1x16x128xf32>
      %339 = arith.mulf %338, %312 : vector<1x16x128xf32>
      %340 = arith.addf %310, %339 : vector<1x16x128xf32>
      %c0_192 = arith.constant 0 : index
      %c0_193 = arith.constant 0 : index
      %c5_194 = arith.constant 5 : index
      %c0_195 = arith.constant 0 : index
      %341 = vector.load %arg7[%c0_192, %c0_193, %c5_194, %c0_195] : memref<2x1x22x128xf32, #tpu.memory_space<vmem>>, vector<1x1x16x128xf32>
      %342 = vector.shape_cast %341 : vector<1x1x16x128xf32> to vector<1x16x128xf32>
      %c35 = arith.constant 35 : index
      %343 = memref.load %arg2[%c35] : memref<99xf32, #tpu.memory_space<smem>>
      %344 = vector.broadcast %343 : f32 to vector<1x16x128xf32>
      %345 = arith.mulf %344, %342 : vector<1x16x128xf32>
      %346 = arith.addf %316, %345 : vector<1x16x128xf32>
      %c36 = arith.constant 36 : index
      %347 = memref.load %arg2[%c36] : memref<99xf32, #tpu.memory_space<smem>>
      %348 = vector.broadcast %347 : f32 to vector<1x16x128xf32>
      %349 = arith.mulf %348, %342 : vector<1x16x128xf32>
      %350 = arith.addf %320, %349 : vector<1x16x128xf32>
      %c37 = arith.constant 37 : index
      %351 = memref.load %arg2[%c37] : memref<99xf32, #tpu.memory_space<smem>>
      %352 = vector.broadcast %351 : f32 to vector<1x16x128xf32>
      %353 = arith.mulf %352, %342 : vector<1x16x128xf32>
      %354 = arith.addf %324, %353 : vector<1x16x128xf32>
      %c38 = arith.constant 38 : index
      %355 = memref.load %arg2[%c38] : memref<99xf32, #tpu.memory_space<smem>>
      %356 = vector.broadcast %355 : f32 to vector<1x16x128xf32>
      %357 = arith.mulf %356, %342 : vector<1x16x128xf32>
      %358 = arith.addf %328, %357 : vector<1x16x128xf32>
      %c39 = arith.constant 39 : index
      %359 = memref.load %arg2[%c39] : memref<99xf32, #tpu.memory_space<smem>>
      %360 = vector.broadcast %359 : f32 to vector<1x16x128xf32>
      %361 = arith.mulf %360, %342 : vector<1x16x128xf32>
      %362 = arith.addf %332, %361 : vector<1x16x128xf32>
      %c40 = arith.constant 40 : index
      %363 = memref.load %arg2[%c40] : memref<99xf32, #tpu.memory_space<smem>>
      %364 = vector.broadcast %363 : f32 to vector<1x16x128xf32>
      %365 = arith.mulf %364, %342 : vector<1x16x128xf32>
      %366 = arith.addf %336, %365 : vector<1x16x128xf32>
      %c41 = arith.constant 41 : index
      %367 = memref.load %arg2[%c41] : memref<99xf32, #tpu.memory_space<smem>>
      %368 = vector.broadcast %367 : f32 to vector<1x16x128xf32>
      %369 = arith.mulf %368, %342 : vector<1x16x128xf32>
      %370 = arith.addf %340, %369 : vector<1x16x128xf32>
      %c0_196 = arith.constant 0 : index
      %c0_197 = arith.constant 0 : index
      %c6_198 = arith.constant 6 : index
      %c0_199 = arith.constant 0 : index
      %371 = vector.load %arg7[%c0_196, %c0_197, %c6_198, %c0_199] : memref<2x1x22x128xf32, #tpu.memory_space<vmem>>, vector<1x1x16x128xf32>
      %372 = vector.shape_cast %371 : vector<1x1x16x128xf32> to vector<1x16x128xf32>
      %c42 = arith.constant 42 : index
      %373 = memref.load %arg2[%c42] : memref<99xf32, #tpu.memory_space<smem>>
      %374 = vector.broadcast %373 : f32 to vector<1x16x128xf32>
      %375 = arith.mulf %374, %372 : vector<1x16x128xf32>
      %376 = arith.addf %346, %375 : vector<1x16x128xf32>
      %c43 = arith.constant 43 : index
      %377 = memref.load %arg2[%c43] : memref<99xf32, #tpu.memory_space<smem>>
      %378 = vector.broadcast %377 : f32 to vector<1x16x128xf32>
      %379 = arith.mulf %378, %372 : vector<1x16x128xf32>
      %380 = arith.addf %350, %379 : vector<1x16x128xf32>
      %c44 = arith.constant 44 : index
      %381 = memref.load %arg2[%c44] : memref<99xf32, #tpu.memory_space<smem>>
      %382 = vector.broadcast %381 : f32 to vector<1x16x128xf32>
      %383 = arith.mulf %382, %372 : vector<1x16x128xf32>
      %384 = arith.addf %354, %383 : vector<1x16x128xf32>
      %c45 = arith.constant 45 : index
      %385 = memref.load %arg2[%c45] : memref<99xf32, #tpu.memory_space<smem>>
      %386 = vector.broadcast %385 : f32 to vector<1x16x128xf32>
      %387 = arith.mulf %386, %372 : vector<1x16x128xf32>
      %388 = arith.addf %358, %387 : vector<1x16x128xf32>
      %c46 = arith.constant 46 : index
      %389 = memref.load %arg2[%c46] : memref<99xf32, #tpu.memory_space<smem>>
      %390 = vector.broadcast %389 : f32 to vector<1x16x128xf32>
      %391 = arith.mulf %390, %372 : vector<1x16x128xf32>
      %392 = arith.addf %362, %391 : vector<1x16x128xf32>
      %c47 = arith.constant 47 : index
      %393 = memref.load %arg2[%c47] : memref<99xf32, #tpu.memory_space<smem>>
      %394 = vector.broadcast %393 : f32 to vector<1x16x128xf32>
      %395 = arith.mulf %394, %372 : vector<1x16x128xf32>
      %396 = arith.addf %366, %395 : vector<1x16x128xf32>
      %c48 = arith.constant 48 : index
      %397 = memref.load %arg2[%c48] : memref<99xf32, #tpu.memory_space<smem>>
      %398 = vector.broadcast %397 : f32 to vector<1x16x128xf32>
      %399 = arith.mulf %398, %372 : vector<1x16x128xf32>
      %400 = arith.addf %370, %399 : vector<1x16x128xf32>
      %c1_200 = arith.constant 1 : index
      %c0_201 = arith.constant 0 : index
      %c0_202 = arith.constant 0 : index
      %c0_203 = arith.constant 0 : index
      %401 = vector.load %arg7[%c1_200, %c0_201, %c0_202, %c0_203] : memref<2x1x22x128xf32, #tpu.memory_space<vmem>>, vector<1x1x16x128xf32>
      %402 = vector.shape_cast %401 : vector<1x1x16x128xf32> to vector<1x16x128xf32>
      %c49 = arith.constant 49 : index
      %403 = memref.load %arg2[%c49] : memref<99xf32, #tpu.memory_space<smem>>
      %404 = vector.broadcast %403 : f32 to vector<1x16x128xf32>
      %405 = arith.mulf %404, %402 : vector<1x16x128xf32>
      %406 = arith.addf %376, %405 : vector<1x16x128xf32>
      %c50 = arith.constant 50 : index
      %407 = memref.load %arg2[%c50] : memref<99xf32, #tpu.memory_space<smem>>
      %408 = vector.broadcast %407 : f32 to vector<1x16x128xf32>
      %409 = arith.mulf %408, %402 : vector<1x16x128xf32>
      %410 = arith.addf %380, %409 : vector<1x16x128xf32>
      %c51 = arith.constant 51 : index
      %411 = memref.load %arg2[%c51] : memref<99xf32, #tpu.memory_space<smem>>
      %412 = vector.broadcast %411 : f32 to vector<1x16x128xf32>
      %413 = arith.mulf %412, %402 : vector<1x16x128xf32>
      %414 = arith.addf %384, %413 : vector<1x16x128xf32>
      %c52 = arith.constant 52 : index
      %415 = memref.load %arg2[%c52] : memref<99xf32, #tpu.memory_space<smem>>
      %416 = vector.broadcast %415 : f32 to vector<1x16x128xf32>
      %417 = arith.mulf %416, %402 : vector<1x16x128xf32>
      %418 = arith.addf %388, %417 : vector<1x16x128xf32>
      %c53 = arith.constant 53 : index
      %419 = memref.load %arg2[%c53] : memref<99xf32, #tpu.memory_space<smem>>
      %420 = vector.broadcast %419 : f32 to vector<1x16x128xf32>
      %421 = arith.mulf %420, %402 : vector<1x16x128xf32>
      %422 = arith.addf %392, %421 : vector<1x16x128xf32>
      %c54 = arith.constant 54 : index
      %423 = memref.load %arg2[%c54] : memref<99xf32, #tpu.memory_space<smem>>
      %424 = vector.broadcast %423 : f32 to vector<1x16x128xf32>
      %425 = arith.mulf %424, %402 : vector<1x16x128xf32>
      %426 = arith.addf %396, %425 : vector<1x16x128xf32>
      %c55 = arith.constant 55 : index
      %427 = memref.load %arg2[%c55] : memref<99xf32, #tpu.memory_space<smem>>
      %428 = vector.broadcast %427 : f32 to vector<1x16x128xf32>
      %429 = arith.mulf %428, %402 : vector<1x16x128xf32>
      %430 = arith.addf %400, %429 : vector<1x16x128xf32>
      %c1_204 = arith.constant 1 : index
      %c0_205 = arith.constant 0 : index
      %c1_206 = arith.constant 1 : index
      %c0_207 = arith.constant 0 : index
      %431 = vector.load %arg7[%c1_204, %c0_205, %c1_206, %c0_207] : memref<2x1x22x128xf32, #tpu.memory_space<vmem>>, vector<1x1x16x128xf32>
      %432 = vector.shape_cast %431 : vector<1x1x16x128xf32> to vector<1x16x128xf32>
      %c56 = arith.constant 56 : index
      %433 = memref.load %arg2[%c56] : memref<99xf32, #tpu.memory_space<smem>>
      %434 = vector.broadcast %433 : f32 to vector<1x16x128xf32>
      %435 = arith.mulf %434, %432 : vector<1x16x128xf32>
      %436 = arith.addf %406, %435 : vector<1x16x128xf32>
      %c57 = arith.constant 57 : index
      %437 = memref.load %arg2[%c57] : memref<99xf32, #tpu.memory_space<smem>>
      %438 = vector.broadcast %437 : f32 to vector<1x16x128xf32>
      %439 = arith.mulf %438, %432 : vector<1x16x128xf32>
      %440 = arith.addf %410, %439 : vector<1x16x128xf32>
      %c58 = arith.constant 58 : index
      %441 = memref.load %arg2[%c58] : memref<99xf32, #tpu.memory_space<smem>>
      %442 = vector.broadcast %441 : f32 to vector<1x16x128xf32>
      %443 = arith.mulf %442, %432 : vector<1x16x128xf32>
      %444 = arith.addf %414, %443 : vector<1x16x128xf32>
      %c59 = arith.constant 59 : index
      %445 = memref.load %arg2[%c59] : memref<99xf32, #tpu.memory_space<smem>>
      %446 = vector.broadcast %445 : f32 to vector<1x16x128xf32>
      %447 = arith.mulf %446, %432 : vector<1x16x128xf32>
      %448 = arith.addf %418, %447 : vector<1x16x128xf32>
      %c60 = arith.constant 60 : index
      %449 = memref.load %arg2[%c60] : memref<99xf32, #tpu.memory_space<smem>>
      %450 = vector.broadcast %449 : f32 to vector<1x16x128xf32>
      %451 = arith.mulf %450, %432 : vector<1x16x128xf32>
      %452 = arith.addf %422, %451 : vector<1x16x128xf32>
      %c61 = arith.constant 61 : index
      %453 = memref.load %arg2[%c61] : memref<99xf32, #tpu.memory_space<smem>>
      %454 = vector.broadcast %453 : f32 to vector<1x16x128xf32>
      %455 = arith.mulf %454, %432 : vector<1x16x128xf32>
      %456 = arith.addf %426, %455 : vector<1x16x128xf32>
      %c62 = arith.constant 62 : index
      %457 = memref.load %arg2[%c62] : memref<99xf32, #tpu.memory_space<smem>>
      %458 = vector.broadcast %457 : f32 to vector<1x16x128xf32>
      %459 = arith.mulf %458, %432 : vector<1x16x128xf32>
      %460 = arith.addf %430, %459 : vector<1x16x128xf32>
      %c1_208 = arith.constant 1 : index
      %c0_209 = arith.constant 0 : index
      %c2_210 = arith.constant 2 : index
      %c0_211 = arith.constant 0 : index
      %461 = vector.load %arg7[%c1_208, %c0_209, %c2_210, %c0_211] : memref<2x1x22x128xf32, #tpu.memory_space<vmem>>, vector<1x1x16x128xf32>
      %462 = vector.shape_cast %461 : vector<1x1x16x128xf32> to vector<1x16x128xf32>
      %c63 = arith.constant 63 : index
      %463 = memref.load %arg2[%c63] : memref<99xf32, #tpu.memory_space<smem>>
      %464 = vector.broadcast %463 : f32 to vector<1x16x128xf32>
      %465 = arith.mulf %464, %462 : vector<1x16x128xf32>
      %466 = arith.addf %436, %465 : vector<1x16x128xf32>
      %c64 = arith.constant 64 : index
      %467 = memref.load %arg2[%c64] : memref<99xf32, #tpu.memory_space<smem>>
      %468 = vector.broadcast %467 : f32 to vector<1x16x128xf32>
      %469 = arith.mulf %468, %462 : vector<1x16x128xf32>
      %470 = arith.addf %440, %469 : vector<1x16x128xf32>
      %c65 = arith.constant 65 : index
      %471 = memref.load %arg2[%c65] : memref<99xf32, #tpu.memory_space<smem>>
      %472 = vector.broadcast %471 : f32 to vector<1x16x128xf32>
      %473 = arith.mulf %472, %462 : vector<1x16x128xf32>
      %474 = arith.addf %444, %473 : vector<1x16x128xf32>
      %c66 = arith.constant 66 : index
      %475 = memref.load %arg2[%c66] : memref<99xf32, #tpu.memory_space<smem>>
      %476 = vector.broadcast %475 : f32 to vector<1x16x128xf32>
      %477 = arith.mulf %476, %462 : vector<1x16x128xf32>
      %478 = arith.addf %448, %477 : vector<1x16x128xf32>
      %c67 = arith.constant 67 : index
      %479 = memref.load %arg2[%c67] : memref<99xf32, #tpu.memory_space<smem>>
      %480 = vector.broadcast %479 : f32 to vector<1x16x128xf32>
      %481 = arith.mulf %480, %462 : vector<1x16x128xf32>
      %482 = arith.addf %452, %481 : vector<1x16x128xf32>
      %c68 = arith.constant 68 : index
      %483 = memref.load %arg2[%c68] : memref<99xf32, #tpu.memory_space<smem>>
      %484 = vector.broadcast %483 : f32 to vector<1x16x128xf32>
      %485 = arith.mulf %484, %462 : vector<1x16x128xf32>
      %486 = arith.addf %456, %485 : vector<1x16x128xf32>
      %c69 = arith.constant 69 : index
      %487 = memref.load %arg2[%c69] : memref<99xf32, #tpu.memory_space<smem>>
      %488 = vector.broadcast %487 : f32 to vector<1x16x128xf32>
      %489 = arith.mulf %488, %462 : vector<1x16x128xf32>
      %490 = arith.addf %460, %489 : vector<1x16x128xf32>
      %c1_212 = arith.constant 1 : index
      %c0_213 = arith.constant 0 : index
      %c3_214 = arith.constant 3 : index
      %c0_215 = arith.constant 0 : index
      %491 = vector.load %arg7[%c1_212, %c0_213, %c3_214, %c0_215] : memref<2x1x22x128xf32, #tpu.memory_space<vmem>>, vector<1x1x16x128xf32>
      %492 = vector.shape_cast %491 : vector<1x1x16x128xf32> to vector<1x16x128xf32>
      %c70 = arith.constant 70 : index
      %493 = memref.load %arg2[%c70] : memref<99xf32, #tpu.memory_space<smem>>
      %494 = vector.broadcast %493 : f32 to vector<1x16x128xf32>
      %495 = arith.mulf %494, %492 : vector<1x16x128xf32>
      %496 = arith.addf %466, %495 : vector<1x16x128xf32>
      %c71 = arith.constant 71 : index
      %497 = memref.load %arg2[%c71] : memref<99xf32, #tpu.memory_space<smem>>
      %498 = vector.broadcast %497 : f32 to vector<1x16x128xf32>
      %499 = arith.mulf %498, %492 : vector<1x16x128xf32>
      %500 = arith.addf %470, %499 : vector<1x16x128xf32>
      %c72 = arith.constant 72 : index
      %501 = memref.load %arg2[%c72] : memref<99xf32, #tpu.memory_space<smem>>
      %502 = vector.broadcast %501 : f32 to vector<1x16x128xf32>
      %503 = arith.mulf %502, %492 : vector<1x16x128xf32>
      %504 = arith.addf %474, %503 : vector<1x16x128xf32>
      %c73 = arith.constant 73 : index
      %505 = memref.load %arg2[%c73] : memref<99xf32, #tpu.memory_space<smem>>
      %506 = vector.broadcast %505 : f32 to vector<1x16x128xf32>
      %507 = arith.mulf %506, %492 : vector<1x16x128xf32>
      %508 = arith.addf %478, %507 : vector<1x16x128xf32>
      %c74 = arith.constant 74 : index
      %509 = memref.load %arg2[%c74] : memref<99xf32, #tpu.memory_space<smem>>
      %510 = vector.broadcast %509 : f32 to vector<1x16x128xf32>
      %511 = arith.mulf %510, %492 : vector<1x16x128xf32>
      %512 = arith.addf %482, %511 : vector<1x16x128xf32>
      %c75 = arith.constant 75 : index
      %513 = memref.load %arg2[%c75] : memref<99xf32, #tpu.memory_space<smem>>
      %514 = vector.broadcast %513 : f32 to vector<1x16x128xf32>
      %515 = arith.mulf %514, %492 : vector<1x16x128xf32>
      %516 = arith.addf %486, %515 : vector<1x16x128xf32>
      %c76 = arith.constant 76 : index
      %517 = memref.load %arg2[%c76] : memref<99xf32, #tpu.memory_space<smem>>
      %518 = vector.broadcast %517 : f32 to vector<1x16x128xf32>
      %519 = arith.mulf %518, %492 : vector<1x16x128xf32>
      %520 = arith.addf %490, %519 : vector<1x16x128xf32>
      %c1_216 = arith.constant 1 : index
      %c0_217 = arith.constant 0 : index
      %c4_218 = arith.constant 4 : index
      %c0_219 = arith.constant 0 : index
      %521 = vector.load %arg7[%c1_216, %c0_217, %c4_218, %c0_219] : memref<2x1x22x128xf32, #tpu.memory_space<vmem>>, vector<1x1x16x128xf32>
      %522 = vector.shape_cast %521 : vector<1x1x16x128xf32> to vector<1x16x128xf32>
      %c77 = arith.constant 77 : index
      %523 = memref.load %arg2[%c77] : memref<99xf32, #tpu.memory_space<smem>>
      %524 = vector.broadcast %523 : f32 to vector<1x16x128xf32>
      %525 = arith.mulf %524, %522 : vector<1x16x128xf32>
      %526 = arith.addf %496, %525 : vector<1x16x128xf32>
      %c78 = arith.constant 78 : index
      %527 = memref.load %arg2[%c78] : memref<99xf32, #tpu.memory_space<smem>>
      %528 = vector.broadcast %527 : f32 to vector<1x16x128xf32>
      %529 = arith.mulf %528, %522 : vector<1x16x128xf32>
      %530 = arith.addf %500, %529 : vector<1x16x128xf32>
      %c79 = arith.constant 79 : index
      %531 = memref.load %arg2[%c79] : memref<99xf32, #tpu.memory_space<smem>>
      %532 = vector.broadcast %531 : f32 to vector<1x16x128xf32>
      %533 = arith.mulf %532, %522 : vector<1x16x128xf32>
      %534 = arith.addf %504, %533 : vector<1x16x128xf32>
      %c80 = arith.constant 80 : index
      %535 = memref.load %arg2[%c80] : memref<99xf32, #tpu.memory_space<smem>>
      %536 = vector.broadcast %535 : f32 to vector<1x16x128xf32>
      %537 = arith.mulf %536, %522 : vector<1x16x128xf32>
      %538 = arith.addf %508, %537 : vector<1x16x128xf32>
      %c81 = arith.constant 81 : index
      %539 = memref.load %arg2[%c81] : memref<99xf32, #tpu.memory_space<smem>>
      %540 = vector.broadcast %539 : f32 to vector<1x16x128xf32>
      %541 = arith.mulf %540, %522 : vector<1x16x128xf32>
      %542 = arith.addf %512, %541 : vector<1x16x128xf32>
      %c82 = arith.constant 82 : index
      %543 = memref.load %arg2[%c82] : memref<99xf32, #tpu.memory_space<smem>>
      %544 = vector.broadcast %543 : f32 to vector<1x16x128xf32>
      %545 = arith.mulf %544, %522 : vector<1x16x128xf32>
      %546 = arith.addf %516, %545 : vector<1x16x128xf32>
      %c83 = arith.constant 83 : index
      %547 = memref.load %arg2[%c83] : memref<99xf32, #tpu.memory_space<smem>>
      %548 = vector.broadcast %547 : f32 to vector<1x16x128xf32>
      %549 = arith.mulf %548, %522 : vector<1x16x128xf32>
      %550 = arith.addf %520, %549 : vector<1x16x128xf32>
      %c1_220 = arith.constant 1 : index
      %c0_221 = arith.constant 0 : index
      %c5_222 = arith.constant 5 : index
      %c0_223 = arith.constant 0 : index
      %551 = vector.load %arg7[%c1_220, %c0_221, %c5_222, %c0_223] : memref<2x1x22x128xf32, #tpu.memory_space<vmem>>, vector<1x1x16x128xf32>
      %552 = vector.shape_cast %551 : vector<1x1x16x128xf32> to vector<1x16x128xf32>
      %c84 = arith.constant 84 : index
      %553 = memref.load %arg2[%c84] : memref<99xf32, #tpu.memory_space<smem>>
      %554 = vector.broadcast %553 : f32 to vector<1x16x128xf32>
      %555 = arith.mulf %554, %552 : vector<1x16x128xf32>
      %556 = arith.addf %526, %555 : vector<1x16x128xf32>
      %c85 = arith.constant 85 : index
      %557 = memref.load %arg2[%c85] : memref<99xf32, #tpu.memory_space<smem>>
      %558 = vector.broadcast %557 : f32 to vector<1x16x128xf32>
      %559 = arith.mulf %558, %552 : vector<1x16x128xf32>
      %560 = arith.addf %530, %559 : vector<1x16x128xf32>
      %c86 = arith.constant 86 : index
      %561 = memref.load %arg2[%c86] : memref<99xf32, #tpu.memory_space<smem>>
      %562 = vector.broadcast %561 : f32 to vector<1x16x128xf32>
      %563 = arith.mulf %562, %552 : vector<1x16x128xf32>
      %564 = arith.addf %534, %563 : vector<1x16x128xf32>
      %c87 = arith.constant 87 : index
      %565 = memref.load %arg2[%c87] : memref<99xf32, #tpu.memory_space<smem>>
      %566 = vector.broadcast %565 : f32 to vector<1x16x128xf32>
      %567 = arith.mulf %566, %552 : vector<1x16x128xf32>
      %568 = arith.addf %538, %567 : vector<1x16x128xf32>
      %c88 = arith.constant 88 : index
      %569 = memref.load %arg2[%c88] : memref<99xf32, #tpu.memory_space<smem>>
      %570 = vector.broadcast %569 : f32 to vector<1x16x128xf32>
      %571 = arith.mulf %570, %552 : vector<1x16x128xf32>
      %572 = arith.addf %542, %571 : vector<1x16x128xf32>
      %c89 = arith.constant 89 : index
      %573 = memref.load %arg2[%c89] : memref<99xf32, #tpu.memory_space<smem>>
      %574 = vector.broadcast %573 : f32 to vector<1x16x128xf32>
      %575 = arith.mulf %574, %552 : vector<1x16x128xf32>
      %576 = arith.addf %546, %575 : vector<1x16x128xf32>
      %c90 = arith.constant 90 : index
      %577 = memref.load %arg2[%c90] : memref<99xf32, #tpu.memory_space<smem>>
      %578 = vector.broadcast %577 : f32 to vector<1x16x128xf32>
      %579 = arith.mulf %578, %552 : vector<1x16x128xf32>
      %580 = arith.addf %550, %579 : vector<1x16x128xf32>
      %c1_224 = arith.constant 1 : index
      %c0_225 = arith.constant 0 : index
      %c6_226 = arith.constant 6 : index
      %c0_227 = arith.constant 0 : index
      %581 = vector.load %arg7[%c1_224, %c0_225, %c6_226, %c0_227] : memref<2x1x22x128xf32, #tpu.memory_space<vmem>>, vector<1x1x16x128xf32>
      %582 = vector.shape_cast %581 : vector<1x1x16x128xf32> to vector<1x16x128xf32>
      %c91 = arith.constant 91 : index
      %583 = memref.load %arg2[%c91] : memref<99xf32, #tpu.memory_space<smem>>
      %584 = vector.broadcast %583 : f32 to vector<1x16x128xf32>
      %585 = arith.mulf %584, %582 : vector<1x16x128xf32>
      %586 = arith.addf %556, %585 : vector<1x16x128xf32>
      %c92 = arith.constant 92 : index
      %587 = memref.load %arg2[%c92] : memref<99xf32, #tpu.memory_space<smem>>
      %588 = vector.broadcast %587 : f32 to vector<1x16x128xf32>
      %589 = arith.mulf %588, %582 : vector<1x16x128xf32>
      %590 = arith.addf %560, %589 : vector<1x16x128xf32>
      %c93 = arith.constant 93 : index
      %591 = memref.load %arg2[%c93] : memref<99xf32, #tpu.memory_space<smem>>
      %592 = vector.broadcast %591 : f32 to vector<1x16x128xf32>
      %593 = arith.mulf %592, %582 : vector<1x16x128xf32>
      %594 = arith.addf %564, %593 : vector<1x16x128xf32>
      %c94 = arith.constant 94 : index
      %595 = memref.load %arg2[%c94] : memref<99xf32, #tpu.memory_space<smem>>
      %596 = vector.broadcast %595 : f32 to vector<1x16x128xf32>
      %597 = arith.mulf %596, %582 : vector<1x16x128xf32>
      %598 = arith.addf %568, %597 : vector<1x16x128xf32>
      %c95 = arith.constant 95 : index
      %599 = memref.load %arg2[%c95] : memref<99xf32, #tpu.memory_space<smem>>
      %600 = vector.broadcast %599 : f32 to vector<1x16x128xf32>
      %601 = arith.mulf %600, %582 : vector<1x16x128xf32>
      %602 = arith.addf %572, %601 : vector<1x16x128xf32>
      %c96 = arith.constant 96 : index
      %603 = memref.load %arg2[%c96] : memref<99xf32, #tpu.memory_space<smem>>
      %604 = vector.broadcast %603 : f32 to vector<1x16x128xf32>
      %605 = arith.mulf %604, %582 : vector<1x16x128xf32>
      %606 = arith.addf %576, %605 : vector<1x16x128xf32>
      %c97 = arith.constant 97 : index
      %607 = memref.load %arg2[%c97] : memref<99xf32, #tpu.memory_space<smem>>
      %608 = vector.broadcast %607 : f32 to vector<1x16x128xf32>
      %609 = arith.mulf %608, %582 : vector<1x16x128xf32>
      %610 = arith.addf %580, %609 : vector<1x16x128xf32>
      %c3_i32 = arith.constant 3 : i32
      %611 = tpu.dynamic_rotate %586 by %c3_i32 dim 2 : vector<1x16x128xf32>, i32 -> vector<1x16x128xf32>
      %612 = arith.addf %598, %611 : vector<1x16x128xf32>
      %c2_i32 = arith.constant 2 : i32
      %613 = tpu.dynamic_rotate %590 by %c2_i32 dim 2 : vector<1x16x128xf32>, i32 -> vector<1x16x128xf32>
      %614 = arith.addf %612, %613 : vector<1x16x128xf32>
      %c1_i32_228 = arith.constant 1 : i32
      %615 = tpu.dynamic_rotate %594 by %c1_i32_228 dim 2 : vector<1x16x128xf32>, i32 -> vector<1x16x128xf32>
      %616 = arith.addf %614, %615 : vector<1x16x128xf32>
      %c127_i32 = arith.constant 127 : i32
      %617 = tpu.dynamic_rotate %602 by %c127_i32 dim 2 : vector<1x16x128xf32>, i32 -> vector<1x16x128xf32>
      %618 = arith.addf %616, %617 : vector<1x16x128xf32>
      %c126_i32 = arith.constant 126 : i32
      %619 = tpu.dynamic_rotate %606 by %c126_i32 dim 2 : vector<1x16x128xf32>, i32 -> vector<1x16x128xf32>
      %620 = arith.addf %618, %619 : vector<1x16x128xf32>
      %c125_i32 = arith.constant 125 : i32
      %621 = tpu.dynamic_rotate %610 by %c125_i32 dim 2 : vector<1x16x128xf32>, i32 -> vector<1x16x128xf32>
      %622 = arith.addf %620, %621 : vector<1x16x128xf32>
      %623 = vector.extract_strided_slice %622 {offsets = [0, 0, 0], sizes = [1, 16, 16], strides = [1, 1, 1]} : vector<1x16x128xf32> to vector<1x16x16xf32>
      %c98 = arith.constant 98 : index
      %624 = memref.load %arg2[%c98] : memref<99xf32, #tpu.memory_space<smem>>
      %625 = vector.broadcast %624 : f32 to vector<1x16x16xf32>
      %626 = arith.addf %623, %625 : vector<1x16x16xf32>
      %cst_229 = arith.constant 0.000000e+00 : f32
      %627 = vector.broadcast %cst_229 : f32 to vector<1x16x16xf32>
      %628 = arith.subf %627, %626 : vector<1x16x16xf32>
      %629 = math.exp %628 : vector<1x16x16xf32>
      %cst_230 = arith.constant 1.000000e+00 : f32
      %630 = vector.broadcast %cst_230 : f32 to vector<1x16x16xf32>
      %631 = arith.addf %630, %629 : vector<1x16x16xf32>
      %632 = tpu.reciprocal %631 : vector<1x16x16xf32> -> vector<1x16x16xf32>
      %633 = vector.extract_strided_slice %632 {offsets = [0, 0, 0], sizes = [1, 1, 16], strides = [1, 1, 1]} : vector<1x16x16xf32> to vector<1x1x16xf32>
      %634 = vector.shape_cast %633 : vector<1x1x16xf32> to vector<1x16xf32>
      %c0_231 = arith.constant 0 : index
      %c0_232 = arith.constant 0 : index
      %c0_233 = arith.constant 0 : index
      %635 = vector.load %arg4[%c0_231, %c0_232, %c0_233] : memref<1x2x128xf32, #tpu.memory_space<vmem>>, vector<1x1x16xf32>
      %636 = vector.shape_cast %635 : vector<1x1x16xf32> to vector<1x16xf32>
      %637 = vector.shape_cast %634 : vector<1x16xf32> to vector<1x1x16xf32>
      tpu.vector_store %arg4[%c0_231, %c0_232, %c0_233], %637 {strides = array<i32>} : memref<1x2x128xf32, #tpu.memory_space<vmem>>, vector<1x1x16xf32>,
      %638 = vector.extract_strided_slice %632 {offsets = [0, 1, 0], sizes = [1, 1, 16], strides = [1, 1, 1]} : vector<1x16x16xf32> to vector<1x1x16xf32>
      %639 = vector.shape_cast %638 : vector<1x1x16xf32> to vector<1x16xf32>
      %c0_234 = arith.constant 0 : index
      %c0_235 = arith.constant 0 : index
      %c16_236 = arith.constant 16 : index
      %640 = vector.load %arg4[%c0_234, %c0_235, %c16_236] : memref<1x2x128xf32, #tpu.memory_space<vmem>>, vector<1x1x16xf32>
      %641 = vector.shape_cast %640 : vector<1x1x16xf32> to vector<1x16xf32>
      %642 = vector.shape_cast %639 : vector<1x16xf32> to vector<1x1x16xf32>
      tpu.vector_store %arg4[%c0_234, %c0_235, %c16_236], %642 {strides = array<i32>} : memref<1x2x128xf32, #tpu.memory_space<vmem>>, vector<1x1x16xf32>,
      %643 = vector.extract_strided_slice %632 {offsets = [0, 2, 0], sizes = [1, 1, 16], strides = [1, 1, 1]} : vector<1x16x16xf32> to vector<1x1x16xf32>
      %644 = vector.shape_cast %643 : vector<1x1x16xf32> to vector<1x16xf32>
      %c0_237 = arith.constant 0 : index
      %c0_238 = arith.constant 0 : index
      %c32_239 = arith.constant 32 : index
      %645 = vector.load %arg4[%c0_237, %c0_238, %c32_239] : memref<1x2x128xf32, #tpu.memory_space<vmem>>, vector<1x1x16xf32>
      %646 = vector.shape_cast %645 : vector<1x1x16xf32> to vector<1x16xf32>
      %647 = vector.shape_cast %644 : vector<1x16xf32> to vector<1x1x16xf32>
      tpu.vector_store %arg4[%c0_237, %c0_238, %c32_239], %647 {strides = array<i32>} : memref<1x2x128xf32, #tpu.memory_space<vmem>>, vector<1x1x16xf32>,
      %648 = vector.extract_strided_slice %632 {offsets = [0, 3, 0], sizes = [1, 1, 16], strides = [1, 1, 1]} : vector<1x16x16xf32> to vector<1x1x16xf32>
      %649 = vector.shape_cast %648 : vector<1x1x16xf32> to vector<1x16xf32>
      %c0_240 = arith.constant 0 : index
      %c0_241 = arith.constant 0 : index
      %c48_242 = arith.constant 48 : index
      %650 = vector.load %arg4[%c0_240, %c0_241, %c48_242] : memref<1x2x128xf32, #tpu.memory_space<vmem>>, vector<1x1x16xf32>
      %651 = vector.shape_cast %650 : vector<1x1x16xf32> to vector<1x16xf32>
      %652 = vector.shape_cast %649 : vector<1x16xf32> to vector<1x1x16xf32>
      tpu.vector_store %arg4[%c0_240, %c0_241, %c48_242], %652 {strides = array<i32>} : memref<1x2x128xf32, #tpu.memory_space<vmem>>, vector<1x1x16xf32>,
      %653 = vector.extract_strided_slice %632 {offsets = [0, 4, 0], sizes = [1, 1, 16], strides = [1, 1, 1]} : vector<1x16x16xf32> to vector<1x1x16xf32>
      %654 = vector.shape_cast %653 : vector<1x1x16xf32> to vector<1x16xf32>
      %c0_243 = arith.constant 0 : index
      %c0_244 = arith.constant 0 : index
      %c64_245 = arith.constant 64 : index
      %655 = vector.load %arg4[%c0_243, %c0_244, %c64_245] : memref<1x2x128xf32, #tpu.memory_space<vmem>>, vector<1x1x16xf32>
      %656 = vector.shape_cast %655 : vector<1x1x16xf32> to vector<1x16xf32>
      %657 = vector.shape_cast %654 : vector<1x16xf32> to vector<1x1x16xf32>
      tpu.vector_store %arg4[%c0_243, %c0_244, %c64_245], %657 {strides = array<i32>} : memref<1x2x128xf32, #tpu.memory_space<vmem>>, vector<1x1x16xf32>,
      %658 = vector.extract_strided_slice %632 {offsets = [0, 5, 0], sizes = [1, 1, 16], strides = [1, 1, 1]} : vector<1x16x16xf32> to vector<1x1x16xf32>
      %659 = vector.shape_cast %658 : vector<1x1x16xf32> to vector<1x16xf32>
      %c0_246 = arith.constant 0 : index
      %c0_247 = arith.constant 0 : index
      %c80_248 = arith.constant 80 : index
      %660 = vector.load %arg4[%c0_246, %c0_247, %c80_248] : memref<1x2x128xf32, #tpu.memory_space<vmem>>, vector<1x1x16xf32>
      %661 = vector.shape_cast %660 : vector<1x1x16xf32> to vector<1x16xf32>
      %662 = vector.shape_cast %659 : vector<1x16xf32> to vector<1x1x16xf32>
      tpu.vector_store %arg4[%c0_246, %c0_247, %c80_248], %662 {strides = array<i32>} : memref<1x2x128xf32, #tpu.memory_space<vmem>>, vector<1x1x16xf32>,
      %663 = vector.extract_strided_slice %632 {offsets = [0, 6, 0], sizes = [1, 1, 16], strides = [1, 1, 1]} : vector<1x16x16xf32> to vector<1x1x16xf32>
      %664 = vector.shape_cast %663 : vector<1x1x16xf32> to vector<1x16xf32>
      %c0_249 = arith.constant 0 : index
      %c0_250 = arith.constant 0 : index
      %c96_251 = arith.constant 96 : index
      %665 = vector.load %arg4[%c0_249, %c0_250, %c96_251] : memref<1x2x128xf32, #tpu.memory_space<vmem>>, vector<1x1x16xf32>
      %666 = vector.shape_cast %665 : vector<1x1x16xf32> to vector<1x16xf32>
      %667 = vector.shape_cast %664 : vector<1x16xf32> to vector<1x1x16xf32>
      tpu.vector_store %arg4[%c0_249, %c0_250, %c96_251], %667 {strides = array<i32>} : memref<1x2x128xf32, #tpu.memory_space<vmem>>, vector<1x1x16xf32>,
      %668 = vector.extract_strided_slice %632 {offsets = [0, 7, 0], sizes = [1, 1, 16], strides = [1, 1, 1]} : vector<1x16x16xf32> to vector<1x1x16xf32>
      %669 = vector.shape_cast %668 : vector<1x1x16xf32> to vector<1x16xf32>
      %c0_252 = arith.constant 0 : index
      %c0_253 = arith.constant 0 : index
      %c112 = arith.constant 112 : index
      %670 = vector.load %arg4[%c0_252, %c0_253, %c112] : memref<1x2x128xf32, #tpu.memory_space<vmem>>, vector<1x1x16xf32>
      %671 = vector.shape_cast %670 : vector<1x1x16xf32> to vector<1x16xf32>
      %672 = vector.shape_cast %669 : vector<1x16xf32> to vector<1x1x16xf32>
      tpu.vector_store %arg4[%c0_252, %c0_253, %c112], %672 {strides = array<i32>} : memref<1x2x128xf32, #tpu.memory_space<vmem>>, vector<1x1x16xf32>,
      %673 = vector.extract_strided_slice %632 {offsets = [0, 8, 0], sizes = [1, 1, 16], strides = [1, 1, 1]} : vector<1x16x16xf32> to vector<1x1x16xf32>
      %674 = vector.shape_cast %673 : vector<1x1x16xf32> to vector<1x16xf32>
      %c0_254 = arith.constant 0 : index
      %c1_255 = arith.constant 1 : index
      %c0_256 = arith.constant 0 : index
      %675 = vector.load %arg4[%c0_254, %c1_255, %c0_256] : memref<1x2x128xf32, #tpu.memory_space<vmem>>, vector<1x1x16xf32>
      %676 = vector.shape_cast %675 : vector<1x1x16xf32> to vector<1x16xf32>
      %677 = vector.shape_cast %674 : vector<1x16xf32> to vector<1x1x16xf32>
      tpu.vector_store %arg4[%c0_254, %c1_255, %c0_256], %677 {strides = array<i32>} : memref<1x2x128xf32, #tpu.memory_space<vmem>>, vector<1x1x16xf32>,
      %678 = vector.extract_strided_slice %632 {offsets = [0, 9, 0], sizes = [1, 1, 16], strides = [1, 1, 1]} : vector<1x16x16xf32> to vector<1x1x16xf32>
      %679 = vector.shape_cast %678 : vector<1x1x16xf32> to vector<1x16xf32>
      %c0_257 = arith.constant 0 : index
      %c1_258 = arith.constant 1 : index
      %c16_259 = arith.constant 16 : index
      %680 = vector.load %arg4[%c0_257, %c1_258, %c16_259] : memref<1x2x128xf32, #tpu.memory_space<vmem>>, vector<1x1x16xf32>
      %681 = vector.shape_cast %680 : vector<1x1x16xf32> to vector<1x16xf32>
      %682 = vector.shape_cast %679 : vector<1x16xf32> to vector<1x1x16xf32>
      tpu.vector_store %arg4[%c0_257, %c1_258, %c16_259], %682 {strides = array<i32>} : memref<1x2x128xf32, #tpu.memory_space<vmem>>, vector<1x1x16xf32>,
      %683 = vector.extract_strided_slice %632 {offsets = [0, 10, 0], sizes = [1, 1, 16], strides = [1, 1, 1]} : vector<1x16x16xf32> to vector<1x1x16xf32>
      %684 = vector.shape_cast %683 : vector<1x1x16xf32> to vector<1x16xf32>
      %c0_260 = arith.constant 0 : index
      %c1_261 = arith.constant 1 : index
      %c32_262 = arith.constant 32 : index
      %685 = vector.load %arg4[%c0_260, %c1_261, %c32_262] : memref<1x2x128xf32, #tpu.memory_space<vmem>>, vector<1x1x16xf32>
      %686 = vector.shape_cast %685 : vector<1x1x16xf32> to vector<1x16xf32>
      %687 = vector.shape_cast %684 : vector<1x16xf32> to vector<1x1x16xf32>
      tpu.vector_store %arg4[%c0_260, %c1_261, %c32_262], %687 {strides = array<i32>} : memref<1x2x128xf32, #tpu.memory_space<vmem>>, vector<1x1x16xf32>,
      %688 = vector.extract_strided_slice %632 {offsets = [0, 11, 0], sizes = [1, 1, 16], strides = [1, 1, 1]} : vector<1x16x16xf32> to vector<1x1x16xf32>
      %689 = vector.shape_cast %688 : vector<1x1x16xf32> to vector<1x16xf32>
      %c0_263 = arith.constant 0 : index
      %c1_264 = arith.constant 1 : index
      %c48_265 = arith.constant 48 : index
      %690 = vector.load %arg4[%c0_263, %c1_264, %c48_265] : memref<1x2x128xf32, #tpu.memory_space<vmem>>, vector<1x1x16xf32>
      %691 = vector.shape_cast %690 : vector<1x1x16xf32> to vector<1x16xf32>
      %692 = vector.shape_cast %689 : vector<1x16xf32> to vector<1x1x16xf32>
      tpu.vector_store %arg4[%c0_263, %c1_264, %c48_265], %692 {strides = array<i32>} : memref<1x2x128xf32, #tpu.memory_space<vmem>>, vector<1x1x16xf32>,
      %693 = vector.extract_strided_slice %632 {offsets = [0, 12, 0], sizes = [1, 1, 16], strides = [1, 1, 1]} : vector<1x16x16xf32> to vector<1x1x16xf32>
      %694 = vector.shape_cast %693 : vector<1x1x16xf32> to vector<1x16xf32>
      %c0_266 = arith.constant 0 : index
      %c1_267 = arith.constant 1 : index
      %c64_268 = arith.constant 64 : index
      %695 = vector.load %arg4[%c0_266, %c1_267, %c64_268] : memref<1x2x128xf32, #tpu.memory_space<vmem>>, vector<1x1x16xf32>
      %696 = vector.shape_cast %695 : vector<1x1x16xf32> to vector<1x16xf32>
      %697 = vector.shape_cast %694 : vector<1x16xf32> to vector<1x1x16xf32>
      tpu.vector_store %arg4[%c0_266, %c1_267, %c64_268], %697 {strides = array<i32>} : memref<1x2x128xf32, #tpu.memory_space<vmem>>, vector<1x1x16xf32>,
      %698 = vector.extract_strided_slice %632 {offsets = [0, 13, 0], sizes = [1, 1, 16], strides = [1, 1, 1]} : vector<1x16x16xf32> to vector<1x1x16xf32>
      %699 = vector.shape_cast %698 : vector<1x1x16xf32> to vector<1x16xf32>
      %c0_269 = arith.constant 0 : index
      %c1_270 = arith.constant 1 : index
      %c80_271 = arith.constant 80 : index
      %700 = vector.load %arg4[%c0_269, %c1_270, %c80_271] : memref<1x2x128xf32, #tpu.memory_space<vmem>>, vector<1x1x16xf32>
      %701 = vector.shape_cast %700 : vector<1x1x16xf32> to vector<1x16xf32>
      %702 = vector.shape_cast %699 : vector<1x16xf32> to vector<1x1x16xf32>
      tpu.vector_store %arg4[%c0_269, %c1_270, %c80_271], %702 {strides = array<i32>} : memref<1x2x128xf32, #tpu.memory_space<vmem>>, vector<1x1x16xf32>,
      %703 = vector.extract_strided_slice %632 {offsets = [0, 14, 0], sizes = [1, 1, 16], strides = [1, 1, 1]} : vector<1x16x16xf32> to vector<1x1x16xf32>
      %704 = vector.shape_cast %703 : vector<1x1x16xf32> to vector<1x16xf32>
      %c0_272 = arith.constant 0 : index
      %c1_273 = arith.constant 1 : index
      %c96_274 = arith.constant 96 : index
      %705 = vector.load %arg4[%c0_272, %c1_273, %c96_274] : memref<1x2x128xf32, #tpu.memory_space<vmem>>, vector<1x1x16xf32>
      %706 = vector.shape_cast %705 : vector<1x1x16xf32> to vector<1x16xf32>
      %707 = vector.shape_cast %704 : vector<1x16xf32> to vector<1x1x16xf32>
      tpu.vector_store %arg4[%c0_272, %c1_273, %c96_274], %707 {strides = array<i32>} : memref<1x2x128xf32, #tpu.memory_space<vmem>>, vector<1x1x16xf32>,
      %708 = vector.extract_strided_slice %632 {offsets = [0, 15, 0], sizes = [1, 1, 16], strides = [1, 1, 1]} : vector<1x16x16xf32> to vector<1x1x16xf32>
      %709 = vector.shape_cast %708 : vector<1x1x16xf32> to vector<1x16xf32>
      %c0_275 = arith.constant 0 : index
      %c1_276 = arith.constant 1 : index
      %c112_277 = arith.constant 112 : index
      %710 = vector.load %arg4[%c0_275, %c1_276, %c112_277] : memref<1x2x128xf32, #tpu.memory_space<vmem>>, vector<1x1x16xf32>
      %711 = vector.shape_cast %710 : vector<1x1x16xf32> to vector<1x16xf32>
      %712 = vector.shape_cast %709 : vector<1x16xf32> to vector<1x1x16xf32>
      tpu.vector_store %arg4[%c0_275, %c1_276, %c112_277], %712 {strides = array<i32>} : memref<1x2x128xf32, #tpu.memory_space<vmem>>, vector<1x1x16xf32>,
    } else {
    }
    return
  }
  func.func @transform_0(%arg0: i32, %arg1: i32, %arg2: memref<99xf32, #tpu.memory_space<smem>>) -> (i32, i32, i32, i32) {
    %c0_i32 = arith.constant 0 : i32
    %c0_i32_0 = arith.constant 0 : i32
    %c0_i32_1 = arith.constant 0 : i32
    return %arg0, %arg1, %c0_i32, %c0_i32_0 : i32, i32, i32, i32
  }
  func.func @transform_1(%arg0: i32, %arg1: i32, %arg2: memref<99xf32, #tpu.memory_space<smem>>) -> (i32, i32, i32) {
    %c0_i32 = arith.constant 0 : i32
    %c0_i32_0 = arith.constant 0 : i32
    %c0_i32_1 = arith.constant 0 : i32
    return %arg0, %c0_i32, %c0_i32_0 : i32, i32, i32
  }
}

</mosaic_0001>

<llo_original>
// kernel: tpu_custom_call.1
$region0: #{tpu_custom_call.1}
  #allocation0 [shape = 'u32[]', space=smem, size = 0x4, offset = 0x4, fixed_abs, tag = 'smem constant byte address 0x4 - core index']
  #allocation1 [shape = 'u32[72,128]{1,0:T(1,128)}', space=vmem, size = 0x9000, scoped, tag = 'internal scratch']
  #allocation2 [shape = 'f32[1,2,128]{2,1,0:T(2,128)}', space=vmem, size = 0x400, scoped, tag = 'scratch operand']
  #allocation3 [shape = 'f32[1,2,128]{2,1,0:T(2,128)}', space=vmem, size = 0x400, scoped, tag = 'scratch operand']
  #allocation4 [shape = 'f32[2,1,22,128]{3,2,1,0:T(8,128)}', space=vmem, size = 0x6000, scoped, tag = 'scratch operand']
  #allocation5 [shape = 's32[1]{0}', space=sflag, size = 0x4, scoped, tag = 'scoped memory for tpu_custom_call.1']
  #allocation6 [shape = 'u8[512]{0}', space=smem, size = 0x200, scoped, tag = 'prefetched SMEM operand 0']
  %s0 = inlined_call_operand.hbm [shape: f32[99], index: 0, kind: input, shape index: {}]
  %s1 = inlined_call_operand.hbm [shape: f32[2,4,2,128], index: 1, kind: input, shape index: {}]
  %s2 = inlined_call_operand.hbm [shape: f32[2,2,128], index: 2, kind: output, shape index: {}]
  %s3 = sld [smem:[#allocation0]]
  $region49: #{tpu_custom_call.1} parent=0
    _
  %s5 = ssub.s32 1, %s3
  %s6 = scalar_select 0, %s5, %s3
  %s8 = sshll.u32 %s0, 4
  %s9 = int_to_ptr.hbm [resolvable:$true] %s8
  %11 = dma.hbm_to_smem %s9, 16, [#allocation6], [#allocation5]
  %13 = dma.done [#allocation5], 16
  %14 = sfence
  $region1: #{tpu_custom_call.1} parent=0
    #allocation7 [shape = 'u8[8192]{0}', space=vmem, size = 0x2000, scoped, tag = 'input window, operand 1']
    #allocation8 [shape = 's32[2]{0}', space=sflag, size = 0x8, scoped, tag = 'scoped memory for tpu_custom_call.1']
    #allocation9 [shape = 's32[2]{0}', space=sflag, size = 0x8, scoped, tag = 'scoped memory for tpu_custom_call.1']
    #allocation10 [shape = 'u8[2048]{0}', space=vmem, size = 0x800, scoped, tag = 'output window, operand 0']
    %15 = vsyncpa [#allocation8], 0
    %s16 = scalar_lea.sflag [#allocation8], 1
    %17 = vsyncpa %s16, 0
    %18 = vsyncpa [#allocation9], 0
    %s19 = scalar_lea.sflag [#allocation9], 1
    %20 = vsyncpa %s19, 0
    loop: start=0, step=1, limit=4
    $region2: #{tpu_custom_call.1} parent=1 // loop_pre_header
      _
    $region3: #{tpu_custom_call.1} parent=1 // loop_header
      %s22 = sphi 0, %s26
      %p23 = scmp.ge.s32.totalorder %s22, 4
      %s29 = sphi 0, %s41
      %s30 = sphi 0, %s37
      %s31 = sphi 0, %s29
      %s32 = sphi 0, %s30
      %s33 = sphi 0, %s31
      %s34 = sphi 0, %s32
      %s46 = sphi 0, %s48
      %s49 = sphi 0, %s46
      %s50 = sphi 0, %s49
      %s66 = sphi 0, %s50
      %s72 = sphi 0, %s74
      %s75 = sphi 0, %s72
      %s76 = sphi 0, %s75
      %s92 = sphi 0, %s76
    $region4: #{tpu_custom_call.1} parent=1 // loop_header_branch
      %25 = sbr.rel (%p23) target = $region8
    $region5: #{tpu_custom_call.1} parent=1 // loop_body
      %s27 = ssub.s32 %s22, 1
      %s28 = ssub.s32 %s22, 2
      %s35 = sadd.s32 1, %s30
      %p36 = scmp.ge.s32.totalorder %s35, 1
      %s37 = scalar_select %p36, 0, %s35
      %s38 = sadd.s32 1, %s29
      %s39 = scalar_select %p36, %s38, %s29
      %p40 = scmp.ge.s32.totalorder %s39, 2
      %s41 = scalar_select %p40, 0, %s39
      %s42 = ssub.s32 %s29, %s41
      %s43 = ssub.s32 %s30, %s37
      %s44 = sor.u32 %s42, %s43
      %p45 = scmp.eq.s32.totalorder %s44, 0
      %s47 = sadd.s32 %s46, 1
      %s48 = scalar_select %p45, %s46, %s47
      %p51 = pneg %p45
      %p52 = scmp.eq.s32.totalorder %s22, 1
      %p53 = por %p51, %p52
      %p54 = scmp.ne.s32.totalorder %s46, %s49
      %p55 = scmp.eq.s32.totalorder %s22, 0
      %p56 = por %p54, %p55
      %p57 = scmp.ne.s32.totalorder %s46, %s49
      %p58 = scmp.eq.s32.totalorder %s27, 1
      %p59 = por %p57, %p58
      %p60 = scmp.ne.s32.totalorder %s49, %s50
      %p61 = scmp.eq.s32.totalorder %s27, 0
      %p62 = por %p60, %p61
      %p63 = scmp.ne.s32.totalorder %s49, %s50
      %p64 = scmp.eq.s32.totalorder %s28, 1
      %p65 = por %p63, %p64
      %p67 = scmp.ne.s32.totalorder %s50, %s66
      %p68 = scmp.eq.s32.totalorder %s28, 0
      %p69 = por %p67, %p68
      %s70 = ssub.s32 %s29, %s41
      %p71 = scmp.eq.s32.totalorder %s70, 0
      %s73 = sadd.s32 %s72, 1
      %s74 = scalar_select %p71, %s72, %s73
      %p77 = pneg %p71
      %p78 = scmp.eq.s32.totalorder %s22, 1
      %p79 = por %p77, %p78
      %p80 = scmp.ne.s32.totalorder %s72, %s75
      %p81 = scmp.eq.s32.totalorder %s22, 0
      %p82 = por %p80, %p81
      %p83 = scmp.ne.s32.totalorder %s72, %s75
      %p84 = scmp.eq.s32.totalorder %s27, 1
      %p85 = por %p83, %p84
      %p86 = scmp.ne.s32.totalorder %s75, %s76
      %p87 = scmp.eq.s32.totalorder %s27, 0
      %p88 = por %p86, %p87
      %p89 = scmp.ne.s32.totalorder %s75, %s76
      %p90 = scmp.eq.s32.totalorder %s28, 1
      %p91 = por %p89, %p90
      %p93 = scmp.ne.s32.totalorder %s76, %s92
      %p94 = scmp.eq.s32.totalorder %s28, 0
      %p95 = por %p93, %p94
      %p96 = scmp.le.s32.totalorder 1, %s22
      %p97 = scmp.lt.s32.totalorder %s22, 3
      %p98 = pnand %p96, %p97
      %p99 = pneg %p98
      // Predicated region
      $region9: #{tpu_custom_call.1} parent=5 // pred_check
        _
      $region10: #{tpu_custom_call.1} parent=5 // pred_check_branch
        %101 = sbr.rel (%p98) target = $region12
      $region11: #{tpu_custom_call.1} parent=5 // pred_region
        %s102 = ssub.s32 %s22, 1
      $region12: #{tpu_custom_call.1} parent=5 // pred_fallthru
        _
      %p103 = scmp.lt.s32.totalorder %s22, 2
      // Predicated region
      $region13: #{tpu_custom_call.1} parent=5 // pred_check
        %p104 = pneg %p103
      $region14: #{tpu_custom_call.1} parent=5 // pred_check_branch
        %106 = sbr.rel (%p104) target = $region16
      $region15: #{tpu_custom_call.1} parent=5 // pred_region
        // Predicated region
        $region17: #{tpu_custom_call.1} parent=15 // pred_check
          %p107 = pneg %p56
        $region18: #{tpu_custom_call.1} parent=15 // pred_check_branch
          %109 = sbr.rel (%p107) target = $region20
        $region19: #{tpu_custom_call.1} parent=15 // pred_region
          %s110 = sand.u32 %s46, 1
          %s111 = scalar_lea.sflag [#allocation8], %s110
          %s112 = sand.u32 %s46, 1
          %s113 = smul.addr %s112, 8
          %s114 = scalar_lea.vmem [#allocation7], %s113
          %s115 = smul.u32 4, %s30
          %117 = vsyncadd %s111, 0
          %s118 = smul.addr %s29, 4
          %s119 = sadd.s32 %s115, %s118
          %s120 = smul.addr %s119, 2
          %s121 = scalar_lea.hbm %s1, %s120
          %s122 = sshll.u32 %s121, 4
          %s123 = int_to_ptr.hbm [resolvable:$true] %s122
          %s124 = sshll.u32 %s114, 4
          %s125 = int_to_ptr.vmem [resolvable:$true] %s124
          %130 = dma.hbm_to_vmem [thread:$0]  %s123, 128, %s125, %s111, 32, 32, 2
        $region20: #{tpu_custom_call.1} parent=15 // pred_fallthru
          _
      $region16: #{tpu_custom_call.1} parent=5 // pred_fallthru
        _
      %p131 = scmp.le.s32.totalorder 1, %s22
      %p132 = scmp.lt.s32.totalorder %s22, 3
      %p133 = pnand %p131, %p132
      %p134 = pneg %p133
      // Predicated region
      $region21: #{tpu_custom_call.1} parent=5 // pred_check
        _
      $region22: #{tpu_custom_call.1} parent=5 // pred_check_branch
        %136 = sbr.rel (%p133) target = $region24
      $region23: #{tpu_custom_call.1} parent=5 // pred_region
        %s137 = ssub.s32 %s22, 1
        %s138 = sand.u32 %s49, 1
        %s139 = scalar_lea.sflag [#allocation8], %s138
        %s140 = sand.u32 %s49, 1
        %s141 = smul.addr %s140, 8
        %s142 = scalar_lea.vmem [#allocation7], %s141
        // Predicated region
        $region25: #{tpu_custom_call.1} parent=23 // pred_check
          %p143 = pneg %p62
        $region26: #{tpu_custom_call.1} parent=23 // pred_check_branch
          %145 = sbr.rel (%p143) target = $region28
        $region27: #{tpu_custom_call.1} parent=23 // pred_region
          %147 = dma.done %s139, 128
        $region28: #{tpu_custom_call.1} parent=23 // pred_fallthru
          _
        %s148 = sand.u32 %s49, 1
        %s149 = scalar_lea.sflag [#allocation8], %s148
        %s150 = sand.u32 %s49, 1
        %s151 = smul.addr %s150, 8
        %s152 = scalar_lea.vmem [#allocation7], %s151
        %p153 = pneg %p62
        %p154 = pneg %p59
        %p155 = pneg %p88
        %p156 = pneg %p85
        %s157 = sand.u32 %s75, 1
        %s158 = scalar_lea.sflag [#allocation9], %s157
        %s159 = sand.u32 %s75, 1
        %s160 = smul.addr %s159, 2
        %s161 = scalar_lea.vmem [#allocation10], %s160
        %s162 = smul.u32 4, %s32
        %p163 = scmp.eq.s32.totalorder %s32, 0
        // Predicated region
        $region29: #{tpu_custom_call.1} parent=23 // pred_check
          %p164 = pneg %p163
        $region30: #{tpu_custom_call.1} parent=23 // pred_check_branch
          %166 = sbr.rel (%p164) target = $region32
        $region31: #{tpu_custom_call.1} parent=23 // pred_region
          %167 = vst [vmem:[#allocation2] sm:$0x3] -inf
          %168 = vst [vmem:[#allocation3] sm:$0x3] 0.0
        $region32: #{tpu_custom_call.1} parent=23 // pred_fallthru
          _
        %v169 = vld [vmem:[#allocation2] sm:$0x3]
        %v170 = vld [vmem:[#allocation3] sm:$0x3]
        %s171 = smul.u32 0, 2
        %s172 = scalar_lea.vmem %s142, %s171 [#allocation7]
        %v173 = vld [vmem:[%s172] sm:$0x3]
        %v174 = vld [vmem:[%s172 + $0x2] sm:$0x3]
        %v175 = vld [vmem:[%s172 + $0x4] sm:$0x3]
        %v176 = vld [vmem:[%s172 + $0x6] sm:$0x3]
        %vm177 = vcmask 1041408
        %v178 = vsel %vm177, %v173, -inf
        %v179 = vsel %vm177, %v174, -inf
        %v180 = vsel %vm177, %v175, -inf
        %v181 = vsel %vm177, %v176, -inf
        %v182 = vmax.f32 %v178, %v179
        %v183 = vmax.f32 %v180, %v181
        %v184 = vmax.f32 %v182, %v183
        %v185 = vmax.f32 %v169, %v184
        %v186 = vsel %vm177, %v173, 0.0
        %v187 = vsel %vm177, %v174, 0.0
        %v188 = vadd.f32 %v186, %v187
        %v189 = vsel %vm177, %v175, 0.0
        %v190 = vadd.f32 %v188, %v189
        %v191 = vsel %vm177, %v176, 0.0
        %v192 = vadd.f32 %v190, %v191
        %v193 = vadd.f32 %v170, %v192
        %194 = vst [vmem:[#allocation2] sm:$0x3] %v185
        %195 = vst [vmem:[#allocation3] sm:$0x3] %v193
        // Predicated region
        $region33: #{tpu_custom_call.1} parent=23 // pred_check
          %p196 = pneg %p163
        $region34: #{tpu_custom_call.1} parent=23 // pred_check_branch
          %198 = sbr.rel (%p196) target = $region36
        $region35: #{tpu_custom_call.1} parent=23 // pred_region
          %vm199 = vcmask 154752
          %200 = vst.msk [vmem:[#allocation4] sm:$0xff] %vm199, 0.0
          %201 = vst.msk [vmem:[#allocation4 + $0x8] sm:$0xff] %vm199, 0.0
          %vm202 = vcmask 152704
          %203 = vst.msk [vmem:[#allocation4 + $0x10] sm:$0x3f] %vm202, 0.0
          %204 = vst.msk [vmem:[#allocation4 + $0x18] sm:$0xff] %vm199, 0.0
          %205 = vst.msk [vmem:[#allocation4 + $0x20] sm:$0xff] %vm199, 0.0
          %206 = vst.msk [vmem:[#allocation4 + $0x28] sm:$0x3f] %vm202, 0.0
          %vm207 = vcmask 1048552
          %208 = vst.msk [vmem:[#allocation4] sm:$0xff] %vm207, 0.0
          %209 = vst.msk [vmem:[#allocation4 + $0x8] sm:$0xff] %vm207, 0.0
          %vm210 = vcmask 1046504
          %211 = vst.msk [vmem:[#allocation4 + $0x10] sm:$0x3f] %vm210, 0.0
          %212 = vst.msk [vmem:[#allocation4 + $0x18] sm:$0xff] %vm207, 0.0
          %213 = vst.msk [vmem:[#allocation4 + $0x20] sm:$0xff] %vm207, 0.0
          %214 = vst.msk [vmem:[#allocation4 + $0x28] sm:$0x3f] %vm210, 0.0
          %vm215 = vcmask 124928
          %216 = vst.msk [vmem:[#allocation4] sm:$0x7] %vm215, 0.0
          %217 = vst.msk [vmem:[#allocation4 + $0x18] sm:$0x7] %vm215, 0.0
          %218 = vst.msk [vmem:[#allocation4 + $0x13] sm:$0x7] %vm215, 0.0
          %219 = vst.msk [vmem:[#allocation4 + $0x2b] sm:$0x7] %vm215, 0.0
          %vm220 = vcmask 122880
          %221 = vst.msk [vmem:[#allocation4 + $0x3] sm:$0x1] %vm220, %v185
          %s222 = scalar_lea.vmem [#allocation4], 24
          %223 = vst.msk [vmem:[%s222 + $0x3] sm:$0x1] %vm220, %v193
          %225 = vrot.lane.b32.xlu0 %v185, 112
          %v226 = vpop.permute.xlu0 %225
          %228 = vst.msk [vmem:[#allocation4 + $0x4] sm:$0x1] %vm220, %v226
          %230 = vrot.lane.b32.xlu0 %v193, 112
          %v231 = vpop.permute.xlu0 %230
          %233 = vst.msk [vmem:[%s222 + $0x4] sm:$0x1] %vm220, %v231
          %234 = vrot.lane.b32.xlu0 %v185, 96
          %v235 = vpop.permute.xlu0 %234
          %237 = vst.msk [vmem:[#allocation4 + $0x5] sm:$0x1] %vm220, %v235
          %238 = vrot.lane.b32.xlu0 %v193, 96
          %v239 = vpop.permute.xlu0 %238
          %241 = vst.msk [vmem:[%s222 + $0x5] sm:$0x1] %vm220, %v239
          %242 = vrot.lane.b32.xlu0 %v185, 80
          %v243 = vpop.permute.xlu0 %242
          %245 = vst.msk [vmem:[#allocation4 + $0x6] sm:$0x1] %vm220, %v243
          %246 = vrot.lane.b32.xlu0 %v193, 80
          %v247 = vpop.permute.xlu0 %246
          %249 = vst.msk [vmem:[%s222 + $0x6] sm:$0x1] %vm220, %v247
          %250 = vrot.lane.b32.xlu0 %v185, 64
          %v251 = vpop.permute.xlu0 %250
          %253 = vst.msk [vmem:[#allocation4 + $0x7] sm:$0x1] %vm220, %v251
          %254 = vrot.lane.b32.xlu0 %v193, 64
          %v255 = vpop.permute.xlu0 %254
          %257 = vst.msk [vmem:[%s222 + $0x7] sm:$0x1] %vm220, %v255
          %258 = vrot.lane.b32.xlu0 %v185, 48
          %v259 = vpop.permute.xlu0 %258
          %261 = vst.msk [vmem:[#allocation4 + $0x8] sm:$0x1] %vm220, %v259
          %262 = vrot.lane.b32.xlu0 %v193, 48
          %v263 = vpop.permute.xlu0 %262
          %265 = vst.msk [vmem:[%s222 + $0x8] sm:$0x1] %vm220, %v263
          %266 = vrot.lane.b32.xlu0 %v185, 32
          %v267 = vpop.permute.xlu0 %266
          %269 = vst.msk [vmem:[#allocation4 + $0x9] sm:$0x1] %vm220, %v267
          %270 = vrot.lane.b32.xlu0 %v193, 32
          %v271 = vpop.permute.xlu0 %270
          %273 = vst.msk [vmem:[%s222 + $0x9] sm:$0x1] %vm220, %v271
          %274 = vrot.lane.b32.xlu0 %v185, 16
          %v275 = vpop.permute.xlu0 %274
          %277 = vst.msk [vmem:[#allocation4 + $0xa] sm:$0x1] %vm220, %v275
          %278 = vrot.lane.b32.xlu0 %v193, 16
          %v279 = vpop.permute.xlu0 %278
          %281 = vst.msk [vmem:[%s222 + $0xa] sm:$0x1] %vm220, %v279
          %vm282 = vcmask 123905
          %283 = vst.msk [vmem:[#allocation4 + $0xa] sm:$0x2] %vm282, %v185
          %284 = vst.msk [vmem:[%s222 + $0xa] sm:$0x2] %vm282, %v193
          %285 = vst.msk [vmem:[#allocation4 + $0xb] sm:$0x2] %vm282, %v226
          %286 = vst.msk [vmem:[%s222 + $0xb] sm:$0x2] %vm282, %v231
          %287 = vst.msk [vmem:[#allocation4 + $0xc] sm:$0x2] %vm282, %v235
          %288 = vst.msk [vmem:[%s222 + $0xc] sm:$0x2] %vm282, %v239
          %289 = vst.msk [vmem:[#allocation4 + $0xd] sm:$0x2] %vm282, %v243
          %290 = vst.msk [vmem:[%s222 + $0xd] sm:$0x2] %vm282, %v247
          %291 = vst.msk [vmem:[#allocation4 + $0xe] sm:$0x2] %vm282, %v251
          %292 = vst.msk [vmem:[%s222 + $0xe] sm:$0x2] %vm282, %v255
          %293 = vst.msk [vmem:[#allocation4 + $0xf] sm:$0x2] %vm282, %v259
          %294 = vst.msk [vmem:[%s222 + $0xf] sm:$0x2] %vm282, %v263
          %295 = vst.msk [vmem:[#allocation4 + $0x10] sm:$0x2] %vm282, %v267
          %296 = vst.msk [vmem:[%s222 + $0x10] sm:$0x2] %vm282, %v271
          %297 = vst.msk [vmem:[#allocation4 + $0x11] sm:$0x2] %vm282, %v275
          %298 = vst.msk [vmem:[%s222 + $0x11] sm:$0x2] %vm282, %v279
          %v299 = vld [vmem:[#allocation4] sm:$0xff]
          %v300 = vld [vmem:[#allocation4 + $0x8] sm:$0xff]
          %s301 = sld [smem:[#allocation6]]
          %v302 = vstv %s301
          %v303 = vmul.f32 %v302, %v299
          %v304 = vmul.f32 %v302, %v300
          %v305 = vadd.f32 %v303, 0.0
          %v306 = vadd.f32 %v304, 0.0
          %s307 = sld [smem:[#allocation6 + $0x1]]
          %v308 = vstv %s307
          %v309 = vmul.f32 %v308, %v299
          %v310 = vmul.f32 %v308, %v300
          %v311 = vadd.f32 %v309, 0.0
          %v312 = vadd.f32 %v310, 0.0
          %s313 = sld [smem:[#allocation6 + $0x2]]
          %v314 = vstv %s313
          %v315 = vmul.f32 %v314, %v299
          %v316 = vmul.f32 %v314, %v300
          %v317 = vadd.f32 %v315, 0.0
          %v318 = vadd.f32 %v316, 0.0
          %s319 = sld [smem:[#allocation6 + $0x3]]
          %v320 = vstv %s319
          %v321 = vmul.f32 %v320, %v299
          %v322 = vmul.f32 %v320, %v300
          %v323 = vadd.f32 %v321, 0.0
          %v324 = vadd.f32 %v322, 0.0
          %s325 = sld [smem:[#allocation6 + $0x4]]
          %v326 = vstv %s325
          %v327 = vmul.f32 %v326, %v299
          %v328 = vmul.f32 %v326, %v300
          %v329 = vadd.f32 %v327, 0.0
          %v330 = vadd.f32 %v328, 0.0
          %s331 = sld [smem:[#allocation6 + $0x5]]
          %v332 = vstv %s331
          %v333 = vmul.f32 %v332, %v299
          %v334 = vmul.f32 %v332, %v300
          %v335 = vadd.f32 %v333, 0.0
          %v336 = vadd.f32 %v334, 0.0
          %s337 = sld [smem:[#allocation6 + $0x6]]
          %v338 = vstv %s337
          %v339 = vmul.f32 %v338, %v299
          %v340 = vmul.f32 %v338, %v300
          %v341 = vadd.f32 %v339, 0.0
          %v342 = vadd.f32 %v340, 0.0
          %v343 = vld [vmem:[#allocation4 + $0x1] sm:$0xff]
          %v344 = vld [vmem:[#allocation4 + $0x9] sm:$0xff]
          %s345 = sld [smem:[#allocation6 + $0x7]]
          %v346 = vstv %s345
          %v347 = vmul.f32 %v346, %v343
          %v348 = vmul.f32 %v346, %v344
          %v349 = vadd.f32 %v305, %v347
          %v350 = vadd.f32 %v306, %v348
          %s351 = sld [smem:[#allocation6 + $0x8]]
          %v352 = vstv %s351
          %v353 = vmul.f32 %v352, %v343
          %v354 = vmul.f32 %v352, %v344
          %v355 = vadd.f32 %v311, %v353
          %v356 = vadd.f32 %v312, %v354
          %s357 = sld [smem:[#allocation6 + $0x9]]
          %v358 = vstv %s357
          %v359 = vmul.f32 %v358, %v343
          %v360 = vmul.f32 %v358, %v344
          %v361 = vadd.f32 %v317, %v359
          %v362 = vadd.f32 %v318, %v360
          %s363 = sld [smem:[#allocation6 + $0xa]]
          %v364 = vstv %s363
          %v365 = vmul.f32 %v364, %v343
          %v366 = vmul.f32 %v364, %v344
          %v367 = vadd.f32 %v323, %v365
          %v368 = vadd.f32 %v324, %v366
          %s369 = sld [smem:[#allocation6 + $0xb]]
          %v370 = vstv %s369
          %v371 = vmul.f32 %v370, %v343
          %v372 = vmul.f32 %v370, %v344
          %v373 = vadd.f32 %v329, %v371
          %v374 = vadd.f32 %v330, %v372
          %s375 = sld [smem:[#allocation6 + $0xc]]
          %v376 = vstv %s375
          %v377 = vmul.f32 %v376, %v343
          %v378 = vmul.f32 %v376, %v344
          %v379 = vadd.f32 %v335, %v377
          %v380 = vadd.f32 %v336, %v378
          %s381 = sld [smem:[#allocation6 + $0xd]]
          %v382 = vstv %s381
          %v383 = vmul.f32 %v382, %v343
          %v384 = vmul.f32 %v382, %v344
          %v385 = vadd.f32 %v341, %v383
          %v386 = vadd.f32 %v342, %v384
          %v387 = vld [vmem:[#allocation4 + $0x2] sm:$0xff]
          %v388 = vld [vmem:[#allocation4 + $0xa] sm:$0xff]
          %s389 = sld [smem:[#allocation6 + $0xe]]
          %v390 = vstv %s389
          %v391 = vmul.f32 %v390, %v387
          %v392 = vmul.f32 %v390, %v388
          %v393 = vadd.f32 %v349, %v391
          %v394 = vadd.f32 %v350, %v392
          %s395 = sld [smem:[#allocation6 + $0xf]]
          %v396 = vstv %s395
          %v397 = vmul.f32 %v396, %v387
          %v398 = vmul.f32 %v396, %v388
          %v399 = vadd.f32 %v355, %v397
          %v400 = vadd.f32 %v356, %v398
          %s401 = sld [smem:[#allocation6 + $0x10]]
          %v402 = vstv %s401
          %v403 = vmul.f32 %v402, %v387
          %v404 = vmul.f32 %v402, %v388
          %v405 = vadd.f32 %v361, %v403
          %v406 = vadd.f32 %v362, %v404
          %s407 = sld [smem:[#allocation6 + $0x11]]
          %v408 = vstv %s407
          %v409 = vmul.f32 %v408, %v387
          %v410 = vmul.f32 %v408, %v388
          %v411 = vadd.f32 %v367, %v409
          %v412 = vadd.f32 %v368, %v410
          %s413 = sld [smem:[#allocation6 + $0x12]]
          %v414 = vstv %s413
          %v415 = vmul.f32 %v414, %v387
          %v416 = vmul.f32 %v414, %v388
          %v417 = vadd.f32 %v373, %v415
          %v418 = vadd.f32 %v374, %v416
          %s419 = sld [smem:[#allocation6 + $0x13]]
          %v420 = vstv %s419
          %v421 = vmul.f32 %v420, %v387
          %v422 = vmul.f32 %v420, %v388
          %v423 = vadd.f32 %v379, %v421
          %v424 = vadd.f32 %v380, %v422
          %s425 = sld [smem:[#allocation6 + $0x14]]
          %v426 = vstv %s425
          %v427 = vmul.f32 %v426, %v387
          %v428 = vmul.f32 %v426, %v388
          %v429 = vadd.f32 %v385, %v427
          %v430 = vadd.f32 %v386, %v428
          %v431 = vld [vmem:[#allocation4 + $0x3] sm:$0xff]
          %v432 = vld [vmem:[#allocation4 + $0xb] sm:$0xff]
          %s433 = sld [smem:[#allocation6 + $0x15]]
          %v434 = vstv %s433
          %v435 = vmul.f32 %v434, %v431
          %v436 = vmul.f32 %v434, %v432
          %v437 = vadd.f32 %v393, %v435
          %v438 = vadd.f32 %v394, %v436
          %s439 = sld [smem:[#allocation6 + $0x16]]
          %v440 = vstv %s439
          %v441 = vmul.f32 %v440, %v431
          %v442 = vmul.f32 %v440, %v432
          %v443 = vadd.f32 %v399, %v441
          %v444 = vadd.f32 %v400, %v442
          %s445 = sld [smem:[#allocation6 + $0x17]]
          %v446 = vstv %s445
          %v447 = vmul.f32 %v446, %v431
          %v448 = vmul.f32 %v446, %v432
          %v449 = vadd.f32 %v405, %v447
          %v450 = vadd.f32 %v406, %v448
          %s451 = sld [smem:[#allocation6 + $0x18]]
          %v452 = vstv %s451
          %v453 = vmul.f32 %v452, %v431
          %v454 = vmul.f32 %v452, %v432
          %v455 = vadd.f32 %v411, %v453
          %v456 = vadd.f32 %v412, %v454
          %s457 = sld [smem:[#allocation6 + $0x19]]
          %v458 = vstv %s457
          %v459 = vmul.f32 %v458, %v431
          %v460 = vmul.f32 %v458, %v432
          %v461 = vadd.f32 %v417, %v459
          %v462 = vadd.f32 %v418, %v460
          %s463 = sld [smem:[#allocation6 + $0x1a]]
          %v464 = vstv %s463
          %v465 = vmul.f32 %v464, %v431
          %v466 = vmul.f32 %v464, %v432
          %v467 = vadd.f32 %v423, %v465
          %v468 = vadd.f32 %v424, %v466
          %s469 = sld [smem:[#allocation6 + $0x1b]]
          %v470 = vstv %s469
          %v471 = vmul.f32 %v470, %v431
          %v472 = vmul.f32 %v470, %v432
          %v473 = vadd.f32 %v429, %v471
          %v474 = vadd.f32 %v430, %v472
          %v475 = vld [vmem:[#allocation4 + $0x4] sm:$0xff]
          %v476 = vld [vmem:[#allocation4 + $0xc] sm:$0xff]
          %s477 = sld [smem:[#allocation6 + $0x1c]]
          %v478 = vstv %s477
          %v479 = vmul.f32 %v478, %v475
          %v480 = vmul.f32 %v478, %v476
          %v481 = vadd.f32 %v437, %v479
          %v482 = vadd.f32 %v438, %v480
          %s483 = sld [smem:[#allocation6 + $0x1d]]
          %v484 = vstv %s483
          %v485 = vmul.f32 %v484, %v475
          %v486 = vmul.f32 %v484, %v476
          %v487 = vadd.f32 %v443, %v485
          %v488 = vadd.f32 %v444, %v486
          %s489 = sld [smem:[#allocation6 + $0x1e]]
          %v490 = vstv %s489
          %v491 = vmul.f32 %v490, %v475
          %v492 = vmul.f32 %v490, %v476
          %v493 = vadd.f32 %v449, %v491
          %v494 = vadd.f32 %v450, %v492
          %s495 = sld [smem:[#allocation6 + $0x1f]]
          %v496 = vstv %s495
          %v497 = vmul.f32 %v496, %v475
          %v498 = vmul.f32 %v496, %v476
          %v499 = vadd.f32 %v455, %v497
          %v500 = vadd.f32 %v456, %v498
          %s501 = sld [smem:[#allocation6 + $0x20]]
          %v502 = vstv %s501
          %v503 = vmul.f32 %v502, %v475
          %v504 = vmul.f32 %v502, %v476
          %v505 = vadd.f32 %v461, %v503
          %v506 = vadd.f32 %v462, %v504
          %s507 = sld [smem:[#allocation6 + $0x21]]
          %v508 = vstv %s507
          %v509 = vmul.f32 %v508, %v475
          %v510 = vmul.f32 %v508, %v476
          %v511 = vadd.f32 %v467, %v509
          %v512 = vadd.f32 %v468, %v510
          %s513 = sld [smem:[#allocation6 + $0x22]]
          %v514 = vstv %s513
          %v515 = vmul.f32 %v514, %v475
          %v516 = vmul.f32 %v514, %v476
          %v517 = vadd.f32 %v473, %v515
          %v518 = vadd.f32 %v474, %v516
          %v519 = vld [vmem:[#allocation4 + $0x5] sm:$0xff]
          %v520 = vld [vmem:[#allocation4 + $0xd] sm:$0xff]
          %s521 = sld [smem:[#allocation6 + $0x23]]
          %v522 = vstv %s521
          %v523 = vmul.f32 %v522, %v519
          %v524 = vmul.f32 %v522, %v520
          %v525 = vadd.f32 %v481, %v523
          %v526 = vadd.f32 %v482, %v524
          %s527 = sld [smem:[#allocation6 + $0x24]]
          %v528 = vstv %s527
          %v529 = vmul.f32 %v528, %v519
          %v530 = vmul.f32 %v528, %v520
          %v531 = vadd.f32 %v487, %v529
          %v532 = vadd.f32 %v488, %v530
          %s533 = sld [smem:[#allocation6 + $0x25]]
          %v534 = vstv %s533
          %v535 = vmul.f32 %v534, %v519
          %v536 = vmul.f32 %v534, %v520
          %v537 = vadd.f32 %v493, %v535
          %v538 = vadd.f32 %v494, %v536
          %s539 = sld [smem:[#allocation6 + $0x26]]
          %v540 = vstv %s539
          %v541 = vmul.f32 %v540, %v519
          %v542 = vmul.f32 %v540, %v520
          %v543 = vadd.f32 %v499, %v541
          %v544 = vadd.f32 %v500, %v542
          %s545 = sld [smem:[#allocation6 + $0x27]]
          %v546 = vstv %s545
          %v547 = vmul.f32 %v546, %v519
          %v548 = vmul.f32 %v546, %v520
          %v549 = vadd.f32 %v505, %v547
          %v550 = vadd.f32 %v506, %v548
          %s551 = sld [smem:[#allocation6 + $0x28]]
          %v552 = vstv %s551
          %v553 = vmul.f32 %v552, %v519
          %v554 = vmul.f32 %v552, %v520
          %v555 = vadd.f32 %v511, %v553
          %v556 = vadd.f32 %v512, %v554
          %s557 = sld [smem:[#allocation6 + $0x29]]
          %v558 = vstv %s557
          %v559 = vmul.f32 %v558, %v519
          %v560 = vmul.f32 %v558, %v520
          %v561 = vadd.f32 %v517, %v559
          %v562 = vadd.f32 %v518, %v560
          %v563 = vld [vmem:[#allocation4 + $0x6] sm:$0xff]
          %v564 = vld [vmem:[#allocation4 + $0xe] sm:$0xff]
          %s565 = sld [smem:[#allocation6 + $0x2a]]
          %v566 = vstv %s565
          %v567 = vmul.f32 %v566, %v563
          %v568 = vmul.f32 %v566, %v564
          %v569 = vadd.f32 %v525, %v567
          %v570 = vadd.f32 %v526, %v568
          %s571 = sld [smem:[#allocation6 + $0x2b]]
          %v572 = vstv %s571
          %v573 = vmul.f32 %v572, %v563
          %v574 = vmul.f32 %v572, %v564
          %v575 = vadd.f32 %v531, %v573
          %v576 = vadd.f32 %v532, %v574
          %s577 = sld [smem:[#allocation6 + $0x2c]]
          %v578 = vstv %s577
          %v579 = vmul.f32 %v578, %v563
          %v580 = vmul.f32 %v578, %v564
          %v581 = vadd.f32 %v537, %v579
          %v582 = vadd.f32 %v538, %v580
          %s583 = sld [smem:[#allocation6 + $0x2d]]
          %v584 = vstv %s583
          %v585 = vmul.f32 %v584, %v563
          %v586 = vmul.f32 %v584, %v564
          %v587 = vadd.f32 %v543, %v585
          %v588 = vadd.f32 %v544, %v586
          %s589 = sld [smem:[#allocation6 + $0x2e]]
          %v590 = vstv %s589
          %v591 = vmul.f32 %v590, %v563
          %v592 = vmul.f32 %v590, %v564
          %v593 = vadd.f32 %v549, %v591
          %v594 = vadd.f32 %v550, %v592
          %s595 = sld [smem:[#allocation6 + $0x2f]]
          %v596 = vstv %s595
          %v597 = vmul.f32 %v596, %v563
          %v598 = vmul.f32 %v596, %v564
          %v599 = vadd.f32 %v555, %v597
          %v600 = vadd.f32 %v556, %v598
          %s601 = sld [smem:[#allocation6 + $0x30]]
          %v602 = vstv %s601
          %v603 = vmul.f32 %v602, %v563
          %v604 = vmul.f32 %v602, %v564
          %v605 = vadd.f32 %v561, %v603
          %v606 = vadd.f32 %v562, %v604
          %v607 = vld [vmem:[%s222] sm:$0xff]
          %v608 = vld [vmem:[%s222 + $0x8] sm:$0xff]
          %s609 = sld [smem:[#allocation6 + $0x31]]
          %v610 = vstv %s609
          %v611 = vmul.f32 %v610, %v607
          %v612 = vmul.f32 %v610, %v608
          %v613 = vadd.f32 %v569, %v611
          %v614 = vadd.f32 %v570, %v612
          %s615 = sld [smem:[#allocation6 + $0x32]]
          %v616 = vstv %s615
          %v617 = vmul.f32 %v616, %v607
          %v618 = vmul.f32 %v616, %v608
          %v619 = vadd.f32 %v575, %v617
          %v620 = vadd.f32 %v576, %v618
          %s621 = sld [smem:[#allocation6 + $0x33]]
          %v622 = vstv %s621
          %v623 = vmul.f32 %v622, %v607
          %v624 = vmul.f32 %v622, %v608
          %v625 = vadd.f32 %v581, %v623
          %v626 = vadd.f32 %v582, %v624
          %s627 = sld [smem:[#allocation6 + $0x34]]
          %v628 = vstv %s627
          %v629 = vmul.f32 %v628, %v607
          %v630 = vmul.f32 %v628, %v608
          %v631 = vadd.f32 %v587, %v629
          %v632 = vadd.f32 %v588, %v630
          %s633 = sld [smem:[#allocation6 + $0x35]]
          %v634 = vstv %s633
          %v635 = vmul.f32 %v634, %v607
          %v636 = vmul.f32 %v634, %v608
          %v637 = vadd.f32 %v593, %v635
          %v638 = vadd.f32 %v594, %v636
          %s639 = sld [smem:[#allocation6 + $0x36]]
          %v640 = vstv %s639
          %v641 = vmul.f32 %v640, %v607
          %v642 = vmul.f32 %v640, %v608
          %v643 = vadd.f32 %v599, %v641
          %v644 = vadd.f32 %v600, %v642
          %s645 = sld [smem:[#allocation6 + $0x37]]
          %v646 = vstv %s645
          %v647 = vmul.f32 %v646, %v607
          %v648 = vmul.f32 %v646, %v608
          %v649 = vadd.f32 %v605, %v647
          %v650 = vadd.f32 %v606, %v648
          %v651 = vld [vmem:[%s222 + $0x1] sm:$0xff]
          %v652 = vld [vmem:[%s222 + $0x9] sm:$0xff]
          %s653 = sld [smem:[#allocation6 + $0x38]]
          %v654 = vstv %s653
          %v655 = vmul.f32 %v654, %v651
          %v656 = vmul.f32 %v654, %v652
          %v657 = vadd.f32 %v613, %v655
          %v658 = vadd.f32 %v614, %v656
          %s659 = sld [smem:[#allocation6 + $0x39]]
          %v660 = vstv %s659
          %v661 = vmul.f32 %v660, %v651
          %v662 = vmul.f32 %v660, %v652
          %v663 = vadd.f32 %v619, %v661
          %v664 = vadd.f32 %v620, %v662
          %s665 = sld [smem:[#allocation6 + $0x3a]]
          %v666 = vstv %s665
          %v667 = vmul.f32 %v666, %v651
          %v668 = vmul.f32 %v666, %v652
          %v669 = vadd.f32 %v625, %v667
          %v670 = vadd.f32 %v626, %v668
          %s671 = sld [smem:[#allocation6 + $0x3b]]
          %v672 = vstv %s671
          %v673 = vmul.f32 %v672, %v651
          %v674 = vmul.f32 %v672, %v652
          %v675 = vadd.f32 %v631, %v673
          %v676 = vadd.f32 %v632, %v674
          %s677 = sld [smem:[#allocation6 + $0x3c]]
          %v678 = vstv %s677
          %v679 = vmul.f32 %v678, %v651
          %v680 = vmul.f32 %v678, %v652
          %v681 = vadd.f32 %v637, %v679
          %v682 = vadd.f32 %v638, %v680
          %s683 = sld [smem:[#allocation6 + $0x3d]]
          %v684 = vstv %s683
          %v685 = vmul.f32 %v684, %v651
          %v686 = vmul.f32 %v684, %v652
          %v687 = vadd.f32 %v643, %v685
          %v688 = vadd.f32 %v644, %v686
          %s689 = sld [smem:[#allocation6 + $0x3e]]
          %v690 = vstv %s689
          %v691 = vmul.f32 %v690, %v651
          %v692 = vmul.f32 %v690, %v652
          %v693 = vadd.f32 %v649, %v691
          %v694 = vadd.f32 %v650, %v692
          %v695 = vld [vmem:[%s222 + $0x2] sm:$0xff]
          %v696 = vld [vmem:[%s222 + $0xa] sm:$0xff]
          %s697 = sld [smem:[#allocation6 + $0x3f]]
          %v698 = vstv %s697
          %v699 = vmul.f32 %v698, %v695
          %v700 = vmul.f32 %v698, %v696
          %v701 = vadd.f32 %v657, %v699
          %v702 = vadd.f32 %v658, %v700
          %s703 = sld [smem:[#allocation6 + $0x40]]
          %v704 = vstv %s703
          %v705 = vmul.f32 %v704, %v695
          %v706 = vmul.f32 %v704, %v696
          %v707 = vadd.f32 %v663, %v705
          %v708 = vadd.f32 %v664, %v706
          %s709 = sld [smem:[#allocation6 + $0x41]]
          %v710 = vstv %s709
          %v711 = vmul.f32 %v710, %v695
          %v712 = vmul.f32 %v710, %v696
          %v713 = vadd.f32 %v669, %v711
          %v714 = vadd.f32 %v670, %v712
          %s715 = sld [smem:[#allocation6 + $0x42]]
          %v716 = vstv %s715
          %v717 = vmul.f32 %v716, %v695
          %v718 = vmul.f32 %v716, %v696
          %v719 = vadd.f32 %v675, %v717
          %v720 = vadd.f32 %v676, %v718
          %s721 = sld [smem:[#allocation6 + $0x43]]
          %v722 = vstv %s721
          %v723 = vmul.f32 %v722, %v695
          %v724 = vmul.f32 %v722, %v696
          %v725 = vadd.f32 %v681, %v723
          %v726 = vadd.f32 %v682, %v724
          %s727 = sld [smem:[#allocation6 + $0x44]]
          %v728 = vstv %s727
          %v729 = vmul.f32 %v728, %v695
          %v730 = vmul.f32 %v728, %v696
          %v731 = vadd.f32 %v687, %v729
          %v732 = vadd.f32 %v688, %v730
          %s733 = sld [smem:[#allocation6 + $0x45]]
          %v734 = vstv %s733
          %v735 = vmul.f32 %v734, %v695
          %v736 = vmul.f32 %v734, %v696
          %v737 = vadd.f32 %v693, %v735
          %v738 = vadd.f32 %v694, %v736
          %v739 = vld [vmem:[%s222 + $0x3] sm:$0xff]
          %v740 = vld [vmem:[%s222 + $0xb] sm:$0xff]
          %s741 = sld [smem:[#allocation6 + $0x46]]
          %v742 = vstv %s741
          %v743 = vmul.f32 %v742, %v739
          %v744 = vmul.f32 %v742, %v740
          %v745 = vadd.f32 %v701, %v743
          %v746 = vadd.f32 %v702, %v744
          %s747 = sld [smem:[#allocation6 + $0x47]]
          %v748 = vstv %s747
          %v749 = vmul.f32 %v748, %v739
          %v750 = vmul.f32 %v748, %v740
          %v751 = vadd.f32 %v707, %v749
          %v752 = vadd.f32 %v708, %v750
          %s753 = sld [smem:[#allocation6 + $0x48]]
          %v754 = vstv %s753
          %v755 = vmul.f32 %v754, %v739
          %v756 = vmul.f32 %v754, %v740
          %v757 = vadd.f32 %v713, %v755
          %v758 = vadd.f32 %v714, %v756
          %s759 = sld [smem:[#allocation6 + $0x49]]
          %v760 = vstv %s759
          %v761 = vmul.f32 %v760, %v739
          %v762 = vmul.f32 %v760, %v740
          %v763 = vadd.f32 %v719, %v761
          %v764 = vadd.f32 %v720, %v762
          %s765 = sld [smem:[#allocation6 + $0x4a]]
          %v766 = vstv %s765
          %v767 = vmul.f32 %v766, %v739
          %v768 = vmul.f32 %v766, %v740
          %v769 = vadd.f32 %v725, %v767
          %v770 = vadd.f32 %v726, %v768
          %s771 = sld [smem:[#allocation6 + $0x4b]]
          %v772 = vstv %s771
          %v773 = vmul.f32 %v772, %v739
          %v774 = vmul.f32 %v772, %v740
          %v775 = vadd.f32 %v731, %v773
          %v776 = vadd.f32 %v732, %v774
          %s777 = sld [smem:[#allocation6 + $0x4c]]
          %v778 = vstv %s777
          %v779 = vmul.f32 %v778, %v739
          %v780 = vmul.f32 %v778, %v740
          %v781 = vadd.f32 %v737, %v779
          %v782 = vadd.f32 %v738, %v780
          %v783 = vld [vmem:[%s222 + $0x4] sm:$0xff]
          %v784 = vld [vmem:[%s222 + $0xc] sm:$0xff]
          %s785 = sld [smem:[#allocation6 + $0x4d]]
          %v786 = vstv %s785
          %v787 = vmul.f32 %v786, %v783
          %v788 = vmul.f32 %v786, %v784
          %v789 = vadd.f32 %v745, %v787
          %v790 = vadd.f32 %v746, %v788
          %s791 = sld [smem:[#allocation6 + $0x4e]]
          %v792 = vstv %s791
          %v793 = vmul.f32 %v792, %v783
          %v794 = vmul.f32 %v792, %v784
          %v795 = vadd.f32 %v751, %v793
          %v796 = vadd.f32 %v752, %v794
          %s797 = sld [smem:[#allocation6 + $0x4f]]
          %v798 = vstv %s797
          %v799 = vmul.f32 %v798, %v783
          %v800 = vmul.f32 %v798, %v784
          %v801 = vadd.f32 %v757, %v799
          %v802 = vadd.f32 %v758, %v800
          %s803 = sld [smem:[#allocation6 + $0x50]]
          %v804 = vstv %s803
          %v805 = vmul.f32 %v804, %v783
          %v806 = vmul.f32 %v804, %v784
          %v807 = vadd.f32 %v763, %v805
          %v808 = vadd.f32 %v764, %v806
          %s809 = sld [smem:[#allocation6 + $0x51]]
          %v810 = vstv %s809
          %v811 = vmul.f32 %v810, %v783
          %v812 = vmul.f32 %v810, %v784
          %v813 = vadd.f32 %v769, %v811
          %v814 = vadd.f32 %v770, %v812
          %s815 = sld [smem:[#allocation6 + $0x52]]
          %v816 = vstv %s815
          %v817 = vmul.f32 %v816, %v783
          %v818 = vmul.f32 %v816, %v784
          %v819 = vadd.f32 %v775, %v817
          %v820 = vadd.f32 %v776, %v818
          %s821 = sld [smem:[#allocation6 + $0x53]]
          %v822 = vstv %s821
          %v823 = vmul.f32 %v822, %v783
          %v824 = vmul.f32 %v822, %v784
          %v825 = vadd.f32 %v781, %v823
          %v826 = vadd.f32 %v782, %v824
          %v827 = vld [vmem:[%s222 + $0x5] sm:$0xff]
          %v828 = vld [vmem:[%s222 + $0xd] sm:$0xff]
          %s829 = sld [smem:[#allocation6 + $0x54]]
          %v830 = vstv %s829
          %v831 = vmul.f32 %v830, %v827
          %v832 = vmul.f32 %v830, %v828
          %v833 = vadd.f32 %v789, %v831
          %v834 = vadd.f32 %v790, %v832
          %s835 = sld [smem:[#allocation6 + $0x55]]
          %v836 = vstv %s835
          %v837 = vmul.f32 %v836, %v827
          %v838 = vmul.f32 %v836, %v828
          %v839 = vadd.f32 %v795, %v837
          %v840 = vadd.f32 %v796, %v838
          %s841 = sld [smem:[#allocation6 + $0x56]]
          %v842 = vstv %s841
          %v843 = vmul.f32 %v842, %v827
          %v844 = vmul.f32 %v842, %v828
          %v845 = vadd.f32 %v801, %v843
          %v846 = vadd.f32 %v802, %v844
          %s847 = sld [smem:[#allocation6 + $0x57]]
          %v848 = vstv %s847
          %v849 = vmul.f32 %v848, %v827
          %v850 = vmul.f32 %v848, %v828
          %v851 = vadd.f32 %v807, %v849
          %v852 = vadd.f32 %v808, %v850
          %s853 = sld [smem:[#allocation6 + $0x58]]
          %v854 = vstv %s853
          %v855 = vmul.f32 %v854, %v827
          %v856 = vmul.f32 %v854, %v828
          %v857 = vadd.f32 %v813, %v855
          %v858 = vadd.f32 %v814, %v856
          %s859 = sld [smem:[#allocation6 + $0x59]]
          %v860 = vstv %s859
          %v861 = vmul.f32 %v860, %v827
          %v862 = vmul.f32 %v860, %v828
          %v863 = vadd.f32 %v819, %v861
          %v864 = vadd.f32 %v820, %v862
          %s865 = sld [smem:[#allocation6 + $0x5a]]
          %v866 = vstv %s865
          %v867 = vmul.f32 %v866, %v827
          %v868 = vmul.f32 %v866, %v828
          %v869 = vadd.f32 %v825, %v867
          %v870 = vadd.f32 %v826, %v868
          %v871 = vld [vmem:[%s222 + $0x6] sm:$0xff]
          %v872 = vld [vmem:[%s222 + $0xe] sm:$0xff]
          %s873 = sld [smem:[#allocation6 + $0x5b]]
          %v874 = vstv %s873
          %v875 = vmul.f32 %v874, %v871
          %v876 = vmul.f32 %v874, %v872
          %v877 = vadd.f32 %v833, %v875
          %v878 = vadd.f32 %v834, %v876
          %s879 = sld [smem:[#allocation6 + $0x5c]]
          %v880 = vstv %s879
          %v881 = vmul.f32 %v880, %v871
          %v882 = vmul.f32 %v880, %v872
          %v883 = vadd.f32 %v839, %v881
          %v884 = vadd.f32 %v840, %v882
          %s885 = sld [smem:[#allocation6 + $0x5d]]
          %v886 = vstv %s885
          %v887 = vmul.f32 %v886, %v871
          %v888 = vmul.f32 %v886, %v872
          %v889 = vadd.f32 %v845, %v887
          %v890 = vadd.f32 %v846, %v888
          %s891 = sld [smem:[#allocation6 + $0x5e]]
          %v892 = vstv %s891
          %v893 = vmul.f32 %v892, %v871
          %v894 = vmul.f32 %v892, %v872
          %v895 = vadd.f32 %v851, %v893
          %v896 = vadd.f32 %v852, %v894
          %s897 = sld [smem:[#allocation6 + $0x5f]]
          %v898 = vstv %s897
          %v899 = vmul.f32 %v898, %v871
          %v900 = vmul.f32 %v898, %v872
          %v901 = vadd.f32 %v857, %v899
          %v902 = vadd.f32 %v858, %v900
          %s903 = sld [smem:[#allocation6 + $0x60]]
          %v904 = vstv %s903
          %v905 = vmul.f32 %v904, %v871
          %v906 = vmul.f32 %v904, %v872
          %v907 = vadd.f32 %v863, %v905
          %v908 = vadd.f32 %v864, %v906
          %s909 = sld [smem:[#allocation6 + $0x61]]
          %v910 = vstv %s909
          %v911 = vmul.f32 %v910, %v871
          %v912 = vmul.f32 %v910, %v872
          %v913 = vadd.f32 %v869, %v911
          %v914 = vadd.f32 %v870, %v912
          %915 = vrot.lane.b32.xlu0 %v877, 3
          %v916 = vpop.permute.xlu0 %915
          %917 = vrot.lane.b32.xlu0 %v878, 3
          %v918 = vpop.permute.xlu0 %917
          %v919 = vadd.f32 %v895, %v916
          %v920 = vadd.f32 %v896, %v918
          %921 = vrot.lane.b32.xlu0 %v883, 2
          %v922 = vpop.permute.xlu0 %921
          %923 = vrot.lane.b32.xlu0 %v884, 2
          %v924 = vpop.permute.xlu0 %923
          %v925 = vadd.f32 %v919, %v922
          %v926 = vadd.f32 %v920, %v924
          %927 = vrot.lane.b32.xlu0 %v889, 1
          %v928 = vpop.permute.xlu0 %927
          %929 = vrot.lane.b32.xlu0 %v890, 1
          %v930 = vpop.permute.xlu0 %929
          %v931 = vadd.f32 %v925, %v928
          %v932 = vadd.f32 %v926, %v930
          %933 = vrot.lane.b32.xlu0 %v901, 127
          %v934 = vpop.permute.xlu0 %933
          %935 = vrot.lane.b32.xlu0 %v902, 127
          %v936 = vpop.permute.xlu0 %935
          %v937 = vadd.f32 %v931, %v934
          %v938 = vadd.f32 %v932, %v936
          %939 = vrot.lane.b32.xlu0 %v907, 126
          %v940 = vpop.permute.xlu0 %939
          %941 = vrot.lane.b32.xlu0 %v908, 126
          %v942 = vpop.permute.xlu0 %941
          %v943 = vadd.f32 %v937, %v940
          %v944 = vadd.f32 %v938, %v942
          %945 = vrot.lane.b32.xlu0 %v913, 125
          %v946 = vpop.permute.xlu0 %945
          %947 = vrot.lane.b32.xlu0 %v914, 125
          %v948 = vpop.permute.xlu0 %947
          %v949 = vadd.f32 %v943, %v946
          %v950 = vadd.f32 %v944, %v948
          %s951 = sld [smem:[#allocation6 + $0x62]]
          %v952 = vstv %s951
          %v953 = vadd.f32 %v949, %v952
          %v954 = vadd.f32 %v950, %v952
          %v955 = vsub.f32 0.0, %v953
          %v956 = vsub.f32 0.0, %v954
          %v957 = vmul.f32 %v955, 1.442695
          %v958 = vpow.pop %v957
          %v959 = vmul.f32 %v956, 1.442695
          %v960 = vpow.pop %v959
          %v961 = vadd.f32 %v958, 1.0
          %v962 = vadd.f32 %v960, 1.0
          %v963 = vrcp.pop %v961
          %v964 = vmul.f32 %v961, %v963
          %v965 = vsub.f32 1.0, %v964
          %v966 = vmul.f32 %v963, %v965
          %v967 = vadd.f32 %v963, %v966
          %vm968 = vweird.f32 %v961
          %vm969 = vweird.f32 %v963
          %vm970 = vmor %vm968, %vm969
          %v971 = vsel %vm970, %v963, %v967
          %v972 = vand.u32 2147483647, %v961
          %vm973 = vcmp.eq.f32.partialorder %v972, 8.507059e+37
          %v974 = vand.u32 %v961, 2147483648
          %v975 = vor.u32 1.1754944e-38, %v974
          %v976 = vsel %vm973, %v975, %v971
          %v977 = vrcp.pop %v962
          %v978 = vmul.f32 %v962, %v977
          %v979 = vsub.f32 1.0, %v978
          %v980 = vmul.f32 %v977, %v979
          %v981 = vadd.f32 %v977, %v980
          %vm982 = vweird.f32 %v962
          %vm983 = vweird.f32 %v977
          %vm984 = vmor %vm982, %vm983
          %v985 = vsel %vm984, %v977, %v981
          %v986 = vand.u32 2147483647, %v962
          %vm987 = vcmp.eq.f32.partialorder %v986, 8.507059e+37
          %v988 = vand.u32 %v962, 2147483648
          %v989 = vor.u32 1.1754944e-38, %v988
          %v990 = vsel %vm987, %v989, %v985
          %991 = vst.msk [vmem:[%s161] sm:$0x1] %vm220, %v976
          %993 = vrot.lane.b32.xlu0 %v976, 16
          %v994 = vpop.permute.xlu0 %993
          %vm996 = vcmask 255105
          %997 = vst.msk [vmem:[%s161 - $0x1] sm:$0x2] %vm996, %v994
          %998 = vrot.lane.b32.xlu0 %v976, 32
          %v999 = vpop.permute.xlu0 %998
          %vm1001 = vcmask 387330
          %1002 = vst.msk [vmem:[%s161 - $0x2] sm:$0x4] %vm1001, %v999
          %1003 = vrot.lane.b32.xlu0 %v976, 48
          %v1004 = vpop.permute.xlu0 %1003
          %vm1006 = vcmask 519555
          %1007 = vst.msk [vmem:[%s161 - $0x3] sm:$0x8] %vm1006, %v1004
          %1008 = vrot.lane.b32.xlu0 %v976, 64
          %v1009 = vpop.permute.xlu0 %1008
          %vm1011 = vcmask 651780
          %1012 = vst.msk [vmem:[%s161 - $0x4] sm:$0x10] %vm1011, %v1009
          %1013 = vrot.lane.b32.xlu0 %v976, 80
          %v1014 = vpop.permute.xlu0 %1013
          %vm1016 = vcmask 784005
          %1017 = vst.msk [vmem:[%s161 - $0x5] sm:$0x20] %vm1016, %v1014
          %1018 = vrot.lane.b32.xlu0 %v976, 96
          %v1019 = vpop.permute.xlu0 %1018
          %vm1021 = vcmask 916230
          %1022 = vst.msk [vmem:[%s161 - $0x6] sm:$0x40] %vm1021, %v1019
          %1023 = vrot.lane.b32.xlu0 %v976, 112
          %v1024 = vpop.permute.xlu0 %1023
          %vm1026 = vcmask 1048455
          %1027 = vst.msk [vmem:[%s161 - $0x7] sm:$0x80] %vm1026, %v1024
          %1028 = vst.msk [vmem:[%s161 + $0x1] sm:$0x1] %vm220, %v990
          %1030 = vrot.lane.b32.xlu0 %v990, 16
          %v1031 = vpop.permute.xlu0 %1030
          %1033 = vst.msk [vmem:[%s161] sm:$0x2] %vm996, %v1031
          %1034 = vrot.lane.b32.xlu0 %v990, 32
          %v1035 = vpop.permute.xlu0 %1034
          %1037 = vst.msk [vmem:[%s161 - $0x1] sm:$0x4] %vm1001, %v1035
          %1038 = vrot.lane.b32.xlu0 %v990, 48
          %v1039 = vpop.permute.xlu0 %1038
          %1041 = vst.msk [vmem:[%s161 - $0x2] sm:$0x8] %vm1006, %v1039
          %1042 = vrot.lane.b32.xlu0 %v990, 64
          %v1043 = vpop.permute.xlu0 %1042
          %1045 = vst.msk [vmem:[%s161 - $0x3] sm:$0x10] %vm1011, %v1043
          %1046 = vrot.lane.b32.xlu0 %v990, 80
          %v1047 = vpop.permute.xlu0 %1046
          %1049 = vst.msk [vmem:[%s161 - $0x4] sm:$0x20] %vm1016, %v1047
          %1050 = vrot.lane.b32.xlu0 %v990, 96
          %v1051 = vpop.permute.xlu0 %1050
          %1053 = vst.msk [vmem:[%s161 - $0x5] sm:$0x40] %vm1021, %v1051
          %1054 = vrot.lane.b32.xlu0 %v990, 112
          %v1055 = vpop.permute.xlu0 %1054
          %1057 = vst.msk [vmem:[%s161 - $0x6] sm:$0x80] %vm1026, %v1055
        $region36: #{tpu_custom_call.1} parent=23 // pred_fallthru
          _
        %s1058 = sand.u32 %s75, 1
        %s1059 = scalar_lea.sflag [#allocation9], %s1058
        %s1060 = sand.u32 %s75, 1
        %s1061 = smul.addr %s1060, 2
        %s1062 = scalar_lea.vmem [#allocation10], %s1061
        // Predicated region
        $region37: #{tpu_custom_call.1} parent=23 // pred_check
          %p1063 = pneg %p85
        $region38: #{tpu_custom_call.1} parent=23 // pred_check_branch
          %1065 = sbr.rel (%p1063) target = $region40
        $region39: #{tpu_custom_call.1} parent=23 // pred_region
          %1067 = vsyncadd %s1059, 0
          %s1068 = smul.addr %s31, 2
          %s1069 = scalar_lea.hbm %s2, %s1068
          %s1071 = sshll.u32 %s1062, 4
          %s1072 = int_to_ptr.vmem [resolvable:$true] %s1071
          %s1073 = sshll.u32 %s1069, 4
          %s1074 = int_to_ptr.hbm [resolvable:$true] %s1073
          %1076 = dma.vmem_to_hbm [thread:$0]  %s1072, 32, %s1074, %s1059
        $region40: #{tpu_custom_call.1} parent=23 // pred_fallthru
          _
      $region24: #{tpu_custom_call.1} parent=5 // pred_fallthru
        _
      %p1077 = scmp.le.s32.totalorder 2, %s22
      // Predicated region
      $region41: #{tpu_custom_call.1} parent=5 // pred_check
        %p1078 = pneg %p1077
      $region42: #{tpu_custom_call.1} parent=5 // pred_check_branch
        %1080 = sbr.rel (%p1078) target = $region44
      $region43: #{tpu_custom_call.1} parent=5 // pred_region
        %s1081 = ssub.s32 %s22, 2
        // Predicated region
        $region45: #{tpu_custom_call.1} parent=43 // pred_check
          %p1082 = pneg %p91
        $region46: #{tpu_custom_call.1} parent=43 // pred_check_branch
          %1084 = sbr.rel (%p1082) target = $region48
        $region47: #{tpu_custom_call.1} parent=43 // pred_region
          %s1085 = sand.u32 %s76, 1
          %s1086 = scalar_lea.sflag [#allocation9], %s1085
          %s1087 = sand.u32 %s76, 1
          %s1088 = smul.addr %s1087, 2
          %s1089 = scalar_lea.vmem [#allocation10], %s1088
          %1091 = dma.done %s1086, 32
        $region48: #{tpu_custom_call.1} parent=43 // pred_fallthru
          _
      $region44: #{tpu_custom_call.1} parent=5 // pred_fallthru
        _
    $region6: #{tpu_custom_call.1} parent=1 // loop_footer
      %s26 = sadd.s32 1, %s22
    $region7: #{tpu_custom_call.1} parent=1 // loop_footer_branch
      %21 = sbr.rel target = $region3
    $region8: #{tpu_custom_call.1} parent=1 // loop_exit
      _
    %1092 = vsyncpa [#allocation8], 1
    %s1093 = scalar_lea.sflag [#allocation8], 1
    %1094 = vsyncpa %s1093, 1
    %1095 = vsyncpa [#allocation9], 1
    %s1096 = scalar_lea.sflag [#allocation9], 1
    %1097 = vsyncpa %s1096, 1

</llo_original>
